<compile_context>
chip_gen: v6e
topology: v6e:2x2x1
jax: 0.10.0
libtpu: 0.0.40
codegen_flags: <defaults>
</compile_context>

<pallas_src>
import functools

import numpy as np
import jax
import jax.numpy as jnp
from jax.experimental import pallas as pl
from jax.experimental.pallas import tpu as pltpu

LANES = 128  # f32 lane width; every packed block is lane-padded to 128.


def _round8(n):
    return ((n + 7) // 8) * 8


def _param_layout(n_layers, k0):
    """Row offsets of each block inside the single packed (rows, 128) buffer.

    k0 = round_up(input_dim, 8).  All offsets are multiples of 8, so every
    in-kernel static slice is sublane-aligned.
    """
    entries = [("w_ih_0", k0)]
    for l in range(1, n_layers):
        entries.append((f"w_ih_{l}", LANES))
    for l in range(n_layers):
        entries.append((f"w_hh_{l}", LANES))
    entries.append(("fc_w", LANES))
    entries.append(("bias", _round8(n_layers + 1)))
    offs, off = {}, 0
    for name, rows in entries:
        offs[name] = (off, rows)
        off += rows
    return offs, off


def pack_params(params, *, input_dim, h, output_size, n_layers):
    """Build the single lane-padded parameter buffer (call ONCE at init)."""
    k0 = _round8(input_dim)
    offs, total = _param_layout(n_layers, k0)
    buf = np.zeros((total, LANES), np.float32)

    def put(name, arr):
        o, _ = offs[name]
        a = np.asarray(arr, np.float32)
        buf[o:o + a.shape[0], :a.shape[1]] = a

    for l in range(n_layers):
        w_ih, w_hh, b_ih, b_hh = params["layers"][l]
        put(f"w_ih_{l}", np.asarray(w_ih).T)          # (in_dim_l, h)
        put(f"w_hh_{l}", np.asarray(w_hh).T)          # (h, h)
    put("fc_w", np.asarray(params["fc_w"]).T)         # (h, output_size)

    bo, _ = offs["bias"]
    for l in range(n_layers):
        _, _, b_ih, b_hh = params["layers"][l]
        buf[bo + l, :h] = np.asarray(b_ih, np.float32) + np.asarray(b_hh, np.float32)
    buf[bo + n_layers, :output_size] = np.asarray(params["fc_b"], np.float32)
    return jnp.asarray(buf)


def _rnn_kernel(n_layers, seq_len, k0, h, output_size,
                x_ref, p_ref, out_ref, hidden_ref):
    offs, _ = _param_layout(n_layers, k0)

    def blk(name):
        o, r = offs[name]
        return p_ref[o:o + r, :]               # aligned static slice of VMEM

    bias_blk = blk("bias")                                       # (>=nl+1, 128)
    biases = [bias_blk[l:l + 1, :] for l in range(n_layers)]     # (1, 128) each
    fc_b = bias_blk[n_layers:n_layers + 1, :]
    w_hh = [blk(f"w_hh_{l}") for l in range(n_layers)]           # (128, 128)
    w_ih_next = [None] + [blk(f"w_ih_{l}") for l in range(1, n_layers)]

    # Hoisted layer-0 input projection + bias: ONE MXU matmul covering the
    # whole sequence, off the serial recurrence critical path.
    x = x_ref[...]                                               # (seq_len, k0)
    proj0 = jnp.dot(x, blk("w_ih_0"),
                    preferred_element_type=jnp.float32) + biases[0]   # (seq_len, 128)

    # Layer/time wavefront, fully unrolled (small static sizes).  Layer l,
    # step t only depends on (layer l, t-1) and (layer l-1, t); fusing the
    # next layer's input projection right after h_t removes the concatenate
    # false dependency, so layer l+1 can start as soon as its first row is
    # ready and the scheduler always has an independent vmatmul to issue.
    zero = jnp.zeros((1, LANES), jnp.float32)
    h_state = [zero] * n_layers
    layer_in = [[None] * seq_len for _ in range(n_layers)]
    for t in range(seq_len):
        layer_in[0][t] = proj0[t:t + 1, :]

    for s in range(seq_len + n_layers - 1):
        for l in range(n_layers):
            t = s - l
            if not (0 <= t < seq_len):
                continue
            pre = layer_in[l][t] + jnp.dot(h_state[l], w_hh[l],
                                           preferred_element_type=jnp.float32)
            h_new = jnp.maximum(pre, 0.0)                        # ReLU
            h_state[l] = h_new
            if l + 1 < n_layers:
                # Fused next-layer input projection: independent MXU work that
                # fills the recurrence dependency bubble of this layer.
                layer_in[l + 1][t] = (
                    jnp.dot(h_new, w_ih_next[l + 1],
                            preferred_element_type=jnp.float32) + biases[l + 1])

    # Final hidden states; out[-1] of the top layer == h_state[-1].
    hidden_full = jnp.concatenate(h_state, axis=0)               # (n_layers, 128)
    hidden_ref[...] = hidden_full[:, :h]

    # fc on the last top-layer hidden + LogSoftmax over the valid lanes only.
    logits = jnp.dot(h_state[-1], blk("fc_w"),
                     preferred_element_type=jnp.float32) + fc_b  # (1, 128)
    lane = jax.lax.broadcasted_iota(jnp.int32, (1, LANES), 1)
    logits = jnp.where(lane < output_size, logits, -1e30)
    m = jnp.max(logits, axis=-1, keepdims=True)
    z = logits - m
    lse = jnp.log(jnp.sum(jnp.exp(z), axis=-1, keepdims=True))
    out_ref[...] = (z - lse)[:, :output_size]


def rnn_forward(x, packed_params, *, input_dim, h, output_size, n_layers):
    seq_len = x.shape[0]
    k0 = _round8(input_dim)
    if k0 != input_dim:                       # no-op when input_dim % 8 == 0
        x = jnp.pad(x, ((0, 0), (0, k0 - input_dim)))
    kernel = functools.partial(_rnn_kernel, n_layers, seq_len, k0, h, output_size)
    vmem = pl.BlockSpec(memory_space=pltpu.MemorySpace.VMEM)
    out_log, hidden = pl.pallas_call(
        kernel,
        out_shape=(jax.ShapeDtypeStruct((1, output_size), jnp.float32),
                   jax.ShapeDtypeStruct((n_layers, h), jnp.float32)),
        in_specs=[vmem, vmem],
        out_specs=(vmem, vmem),
    )(x, packed_params)
    return out_log, hidden


def rnn_forward_ref(x, params, *, h, n_layers):
    """Pure-JAX reference matching torch.nn.RNN(..., nonlinearity='relu')."""
    seq_in = x
    finals = []
    for l in range(n_layers):
        w_ih, w_hh, b_ih, b_hh = params["layers"][l]
        h_t = jnp.zeros((h,), jnp.float32)
        outs = []
        for t in range(seq_in.shape[0]):
            pre = w_ih @ seq_in[t] + b_ih + w_hh @ h_t + b_hh
            h_t = jnp.maximum(pre, 0.0)
            outs.append(h_t)
        finals.append(h_t)
        seq_in = jnp.stack(outs)
    logits = params["fc_w"] @ seq_in[-1] + params["fc_b"]
    logp = logits - jax.scipy.special.logsumexp(logits)
    return logp[None, :], jnp.stack(finals)


def init_params(key, *, input_dim, h, output_size, n_layers):
    """Deterministic init mirroring PyTorch shapes: uniform(-1/sqrt(h), 1/sqrt(h))."""
    bound = 1.0 / jnp.sqrt(jnp.float32(h))
    keys = jax.random.split(key, 4 * n_layers + 2)
    layers = []
    for l in range(n_layers):
        in_dim = input_dim if l == 0 else h
        k0, k1, k2, k3 = keys[4 * l:4 * l + 4]
        layers.append((
            jax.random.uniform(k0, (h, in_dim), jnp.float32, -bound, bound),  # W_ih
            jax.random.uniform(k1, (h, h), jnp.float32, -bound, bound),       # W_hh
            jax.random.uniform(k2, (h,), jnp.float32, -bound, bound),         # b_ih
            jax.random.uniform(k3, (h,), jnp.float32, -bound, bound),         # b_hh
        ))
    fc_w = jax.random.uniform(keys[-2], (output_size, h), jnp.float32, -bound, bound)
    fc_b = jax.random.uniform(keys[-1], (output_size,), jnp.float32, -bound, bound)
    return {"layers": layers, "fc_w": fc_w, "fc_b": fc_b}


if __name__ == "__main__":
    input_dim, h, output_size, n_layers, seq_len = 16, 32, 8, 2, 8

    key = jax.random.PRNGKey(0)
    k_x, k_p = jax.random.split(key)
    x = jax.random.normal(k_x, (seq_len, input_dim), jnp.float32)
    params = init_params(k_p, input_dim=input_dim, h=h,
                         output_size=output_size, n_layers=n_layers)

    # Pack / transpose / lane-pad ONCE (not per forward call).
    packed = pack_params(params, input_dim=input_dim, h=h,
                         output_size=output_size, n_layers=n_layers)

    out_log, hidden = rnn_forward(x, packed, input_dim=input_dim, h=h,
                                  n_layers=n_layers, output_size=output_size)
    jax.block_until_ready((out_log, hidden))

    ref_log, ref_hidden = rnn_forward_ref(x, params, h=h, n_layers=n_layers)
    assert out_log.shape == (1, output_size)
    assert hidden.shape == (n_layers, h)
    assert jnp.allclose(out_log, ref_log, atol=1e-4, rtol=1e-4)
    assert jnp.allclose(hidden, ref_hidden, atol=1e-4, rtol=1e-4)

    print("KERNEL_OK")
</pallas_src>

<mosaic_0001>
module attributes {stable_mosaic.version = 11 : i64} {
  func.func @_rnn_kernel(%arg0: memref<8x16xf32, #tpu.memory_space<vmem>>, %arg1: memref<536x128xf32, #tpu.memory_space<vmem>>, %arg2: memref<1x8xf32, #tpu.memory_space<vmem>>, %arg3: memref<2x32xf32, #tpu.memory_space<vmem>>) attributes {dimension_semantics = [], scalar_prefetch = 0 : i64, scratch_operands = 0 : i64, tpu.core_type = #tpu.core_type<tc>} {
    %c528 = arith.constant 528 : index
    %c0 = arith.constant 0 : index
    %0 = vector.load %arg1[%c528, %c0] : memref<536x128xf32, #tpu.memory_space<vmem>>, vector<8x128xf32>
    %1 = vector.extract_strided_slice %0 {offsets = [0, 0], sizes = [1, 128], strides = [1, 1]} : vector<8x128xf32> to vector<1x128xf32>
    %2 = vector.extract_strided_slice %0 {offsets = [1, 0], sizes = [1, 128], strides = [1, 1]} : vector<8x128xf32> to vector<1x128xf32>
    %3 = vector.extract_strided_slice %0 {offsets = [2, 0], sizes = [1, 128], strides = [1, 1]} : vector<8x128xf32> to vector<1x128xf32>
    %c144 = arith.constant 144 : index
    %c0_0 = arith.constant 0 : index
    %4 = vector.load %arg1[%c144, %c0_0] : memref<536x128xf32, #tpu.memory_space<vmem>>, vector<128x128xf32>
    %c272 = arith.constant 272 : index
    %c0_1 = arith.constant 0 : index
    %5 = vector.load %arg1[%c272, %c0_1] : memref<536x128xf32, #tpu.memory_space<vmem>>, vector<128x128xf32>
    %c16 = arith.constant 16 : index
    %c0_2 = arith.constant 0 : index
    %6 = vector.load %arg1[%c16, %c0_2] : memref<536x128xf32, #tpu.memory_space<vmem>>, vector<128x128xf32>
    %c0_3 = arith.constant 0 : index
    %c0_4 = arith.constant 0 : index
    %7 = vector.load %arg0[%c0_3, %c0_4] : memref<8x16xf32, #tpu.memory_space<vmem>>, vector<8x16xf32>
    %c0_5 = arith.constant 0 : index
    %c0_6 = arith.constant 0 : index
    %8 = vector.load %arg1[%c0_5, %c0_6] : memref<536x128xf32, #tpu.memory_space<vmem>>, vector<16x128xf32>
    %cst = arith.constant dense<0.000000e+00> : vector<8x128xf32>
    %9 = tpu.matmul %7, %8, %cst {dimension_numbers = #tpu.dot_dimension_numbers<[1], [0], [0], [1], [0, 0, 1, 1], [], []>} : vector<8x16xf32>, vector<16x128xf32>, vector<8x128xf32> -> vector<8x128xf32>
    %10 = vector.broadcast %1 : vector<1x128xf32> to vector<8x128xf32>
    %11 = arith.addf %9, %10 : vector<8x128xf32>
    %cst_7 = arith.constant 0.000000e+00 : f32
    %12 = vector.broadcast %cst_7 : f32 to vector<1x128xf32>
    %13 = vector.extract_strided_slice %11 {offsets = [0, 0], sizes = [1, 128], strides = [1, 1]} : vector<8x128xf32> to vector<1x128xf32>
    %14 = vector.extract_strided_slice %11 {offsets = [1, 0], sizes = [1, 128], strides = [1, 1]} : vector<8x128xf32> to vector<1x128xf32>
    %15 = vector.extract_strided_slice %11 {offsets = [2, 0], sizes = [1, 128], strides = [1, 1]} : vector<8x128xf32> to vector<1x128xf32>
    %16 = vector.extract_strided_slice %11 {offsets = [3, 0], sizes = [1, 128], strides = [1, 1]} : vector<8x128xf32> to vector<1x128xf32>
    %17 = vector.extract_strided_slice %11 {offsets = [4, 0], sizes = [1, 128], strides = [1, 1]} : vector<8x128xf32> to vector<1x128xf32>
    %18 = vector.extract_strided_slice %11 {offsets = [5, 0], sizes = [1, 128], strides = [1, 1]} : vector<8x128xf32> to vector<1x128xf32>
    %19 = vector.extract_strided_slice %11 {offsets = [6, 0], sizes = [1, 128], strides = [1, 1]} : vector<8x128xf32> to vector<1x128xf32>
    %20 = vector.extract_strided_slice %11 {offsets = [7, 0], sizes = [1, 128], strides = [1, 1]} : vector<8x128xf32> to vector<1x128xf32>
    %cst_8 = arith.constant dense<0.000000e+00> : vector<1x128xf32>
    %21 = tpu.matmul %12, %4, %cst_8 {dimension_numbers = #tpu.dot_dimension_numbers<[1], [0], [0], [1], [0, 0, 1, 1], [], []>} : vector<1x128xf32>, vector<128x128xf32>, vector<1x128xf32> -> vector<1x128xf32>
    %22 = arith.addf %13, %21 : vector<1x128xf32>
    %cst_9 = arith.constant 0.000000e+00 : f32
    %23 = vector.broadcast %cst_9 : f32 to vector<1x128xf32>
    %24 = arith.maximumf %22, %23 : vector<1x128xf32>
    %cst_10 = arith.constant dense<0.000000e+00> : vector<1x128xf32>
    %25 = tpu.matmul %24, %6, %cst_10 {dimension_numbers = #tpu.dot_dimension_numbers<[1], [0], [0], [1], [0, 0, 1, 1], [], []>} : vector<1x128xf32>, vector<128x128xf32>, vector<1x128xf32> -> vector<1x128xf32>
    %26 = arith.addf %25, %2 : vector<1x128xf32>
    %cst_11 = arith.constant dense<0.000000e+00> : vector<1x128xf32>
    %27 = tpu.matmul %24, %4, %cst_11 {dimension_numbers = #tpu.dot_dimension_numbers<[1], [0], [0], [1], [0, 0, 1, 1], [], []>} : vector<1x128xf32>, vector<128x128xf32>, vector<1x128xf32> -> vector<1x128xf32>
    %28 = arith.addf %14, %27 : vector<1x128xf32>
    %cst_12 = arith.constant 0.000000e+00 : f32
    %29 = vector.broadcast %cst_12 : f32 to vector<1x128xf32>
    %30 = arith.maximumf %28, %29 : vector<1x128xf32>
    %cst_13 = arith.constant dense<0.000000e+00> : vector<1x128xf32>
    %31 = tpu.matmul %30, %6, %cst_13 {dimension_numbers = #tpu.dot_dimension_numbers<[1], [0], [0], [1], [0, 0, 1, 1], [], []>} : vector<1x128xf32>, vector<128x128xf32>, vector<1x128xf32> -> vector<1x128xf32>
    %32 = arith.addf %31, %2 : vector<1x128xf32>
    %cst_14 = arith.constant dense<0.000000e+00> : vector<1x128xf32>
    %33 = tpu.matmul %12, %5, %cst_14 {dimension_numbers = #tpu.dot_dimension_numbers<[1], [0], [0], [1], [0, 0, 1, 1], [], []>} : vector<1x128xf32>, vector<128x128xf32>, vector<1x128xf32> -> vector<1x128xf32>
    %34 = arith.addf %26, %33 : vector<1x128xf32>
    %cst_15 = arith.constant 0.000000e+00 : f32
    %35 = vector.broadcast %cst_15 : f32 to vector<1x128xf32>
    %36 = arith.maximumf %34, %35 : vector<1x128xf32>
    %cst_16 = arith.constant dense<0.000000e+00> : vector<1x128xf32>
    %37 = tpu.matmul %30, %4, %cst_16 {dimension_numbers = #tpu.dot_dimension_numbers<[1], [0], [0], [1], [0, 0, 1, 1], [], []>} : vector<1x128xf32>, vector<128x128xf32>, vector<1x128xf32> -> vector<1x128xf32>
    %38 = arith.addf %15, %37 : vector<1x128xf32>
    %cst_17 = arith.constant 0.000000e+00 : f32
    %39 = vector.broadcast %cst_17 : f32 to vector<1x128xf32>
    %40 = arith.maximumf %38, %39 : vector<1x128xf32>
    %cst_18 = arith.constant dense<0.000000e+00> : vector<1x128xf32>
    %41 = tpu.matmul %40, %6, %cst_18 {dimension_numbers = #tpu.dot_dimension_numbers<[1], [0], [0], [1], [0, 0, 1, 1], [], []>} : vector<1x128xf32>, vector<128x128xf32>, vector<1x128xf32> -> vector<1x128xf32>
    %42 = arith.addf %41, %2 : vector<1x128xf32>
    %cst_19 = arith.constant dense<0.000000e+00> : vector<1x128xf32>
    %43 = tpu.matmul %36, %5, %cst_19 {dimension_numbers = #tpu.dot_dimension_numbers<[1], [0], [0], [1], [0, 0, 1, 1], [], []>} : vector<1x128xf32>, vector<128x128xf32>, vector<1x128xf32> -> vector<1x128xf32>
    %44 = arith.addf %32, %43 : vector<1x128xf32>
    %cst_20 = arith.constant 0.000000e+00 : f32
    %45 = vector.broadcast %cst_20 : f32 to vector<1x128xf32>
    %46 = arith.maximumf %44, %45 : vector<1x128xf32>
    %cst_21 = arith.constant dense<0.000000e+00> : vector<1x128xf32>
    %47 = tpu.matmul %40, %4, %cst_21 {dimension_numbers = #tpu.dot_dimension_numbers<[1], [0], [0], [1], [0, 0, 1, 1], [], []>} : vector<1x128xf32>, vector<128x128xf32>, vector<1x128xf32> -> vector<1x128xf32>
    %48 = arith.addf %16, %47 : vector<1x128xf32>
    %cst_22 = arith.constant 0.000000e+00 : f32
    %49 = vector.broadcast %cst_22 : f32 to vector<1x128xf32>
    %50 = arith.maximumf %48, %49 : vector<1x128xf32>
    %cst_23 = arith.constant dense<0.000000e+00> : vector<1x128xf32>
    %51 = tpu.matmul %50, %6, %cst_23 {dimension_numbers = #tpu.dot_dimension_numbers<[1], [0], [0], [1], [0, 0, 1, 1], [], []>} : vector<1x128xf32>, vector<128x128xf32>, vector<1x128xf32> -> vector<1x128xf32>
    %52 = arith.addf %51, %2 : vector<1x128xf32>
    %cst_24 = arith.constant dense<0.000000e+00> : vector<1x128xf32>
    %53 = tpu.matmul %46, %5, %cst_24 {dimension_numbers = #tpu.dot_dimension_numbers<[1], [0], [0], [1], [0, 0, 1, 1], [], []>} : vector<1x128xf32>, vector<128x128xf32>, vector<1x128xf32> -> vector<1x128xf32>
    %54 = arith.addf %42, %53 : vector<1x128xf32>
    %cst_25 = arith.constant 0.000000e+00 : f32
    %55 = vector.broadcast %cst_25 : f32 to vector<1x128xf32>
    %56 = arith.maximumf %54, %55 : vector<1x128xf32>
    %cst_26 = arith.constant dense<0.000000e+00> : vector<1x128xf32>
    %57 = tpu.matmul %50, %4, %cst_26 {dimension_numbers = #tpu.dot_dimension_numbers<[1], [0], [0], [1], [0, 0, 1, 1], [], []>} : vector<1x128xf32>, vector<128x128xf32>, vector<1x128xf32> -> vector<1x128xf32>
    %58 = arith.addf %17, %57 : vector<1x128xf32>
    %cst_27 = arith.constant 0.000000e+00 : f32
    %59 = vector.broadcast %cst_27 : f32 to vector<1x128xf32>
    %60 = arith.maximumf %58, %59 : vector<1x128xf32>
    %cst_28 = arith.constant dense<0.000000e+00> : vector<1x128xf32>
    %61 = tpu.matmul %60, %6, %cst_28 {dimension_numbers = #tpu.dot_dimension_numbers<[1], [0], [0], [1], [0, 0, 1, 1], [], []>} : vector<1x128xf32>, vector<128x128xf32>, vector<1x128xf32> -> vector<1x128xf32>
    %62 = arith.addf %61, %2 : vector<1x128xf32>
    %cst_29 = arith.constant dense<0.000000e+00> : vector<1x128xf32>
    %63 = tpu.matmul %56, %5, %cst_29 {dimension_numbers = #tpu.dot_dimension_numbers<[1], [0], [0], [1], [0, 0, 1, 1], [], []>} : vector<1x128xf32>, vector<128x128xf32>, vector<1x128xf32> -> vector<1x128xf32>
    %64 = arith.addf %52, %63 : vector<1x128xf32>
    %cst_30 = arith.constant 0.000000e+00 : f32
    %65 = vector.broadcast %cst_30 : f32 to vector<1x128xf32>
    %66 = arith.maximumf %64, %65 : vector<1x128xf32>
    %cst_31 = arith.constant dense<0.000000e+00> : vector<1x128xf32>
    %67 = tpu.matmul %60, %4, %cst_31 {dimension_numbers = #tpu.dot_dimension_numbers<[1], [0], [0], [1], [0, 0, 1, 1], [], []>} : vector<1x128xf32>, vector<128x128xf32>, vector<1x128xf32> -> vector<1x128xf32>
    %68 = arith.addf %18, %67 : vector<1x128xf32>
    %cst_32 = arith.constant 0.000000e+00 : f32
    %69 = vector.broadcast %cst_32 : f32 to vector<1x128xf32>
    %70 = arith.maximumf %68, %69 : vector<1x128xf32>
    %cst_33 = arith.constant dense<0.000000e+00> : vector<1x128xf32>
    %71 = tpu.matmul %70, %6, %cst_33 {dimension_numbers = #tpu.dot_dimension_numbers<[1], [0], [0], [1], [0, 0, 1, 1], [], []>} : vector<1x128xf32>, vector<128x128xf32>, vector<1x128xf32> -> vector<1x128xf32>
    %72 = arith.addf %71, %2 : vector<1x128xf32>
    %cst_34 = arith.constant dense<0.000000e+00> : vector<1x128xf32>
    %73 = tpu.matmul %66, %5, %cst_34 {dimension_numbers = #tpu.dot_dimension_numbers<[1], [0], [0], [1], [0, 0, 1, 1], [], []>} : vector<1x128xf32>, vector<128x128xf32>, vector<1x128xf32> -> vector<1x128xf32>
    %74 = arith.addf %62, %73 : vector<1x128xf32>
    %cst_35 = arith.constant 0.000000e+00 : f32
    %75 = vector.broadcast %cst_35 : f32 to vector<1x128xf32>
    %76 = arith.maximumf %74, %75 : vector<1x128xf32>
    %cst_36 = arith.constant dense<0.000000e+00> : vector<1x128xf32>
    %77 = tpu.matmul %70, %4, %cst_36 {dimension_numbers = #tpu.dot_dimension_numbers<[1], [0], [0], [1], [0, 0, 1, 1], [], []>} : vector<1x128xf32>, vector<128x128xf32>, vector<1x128xf32> -> vector<1x128xf32>
    %78 = arith.addf %19, %77 : vector<1x128xf32>
    %cst_37 = arith.constant 0.000000e+00 : f32
    %79 = vector.broadcast %cst_37 : f32 to vector<1x128xf32>
    %80 = arith.maximumf %78, %79 : vector<1x128xf32>
    %cst_38 = arith.constant dense<0.000000e+00> : vector<1x128xf32>
    %81 = tpu.matmul %80, %6, %cst_38 {dimension_numbers = #tpu.dot_dimension_numbers<[1], [0], [0], [1], [0, 0, 1, 1], [], []>} : vector<1x128xf32>, vector<128x128xf32>, vector<1x128xf32> -> vector<1x128xf32>
    %82 = arith.addf %81, %2 : vector<1x128xf32>
    %cst_39 = arith.constant dense<0.000000e+00> : vector<1x128xf32>
    %83 = tpu.matmul %76, %5, %cst_39 {dimension_numbers = #tpu.dot_dimension_numbers<[1], [0], [0], [1], [0, 0, 1, 1], [], []>} : vector<1x128xf32>, vector<128x128xf32>, vector<1x128xf32> -> vector<1x128xf32>
    %84 = arith.addf %72, %83 : vector<1x128xf32>
    %cst_40 = arith.constant 0.000000e+00 : f32
    %85 = vector.broadcast %cst_40 : f32 to vector<1x128xf32>
    %86 = arith.maximumf %84, %85 : vector<1x128xf32>
    %cst_41 = arith.constant dense<0.000000e+00> : vector<1x128xf32>
    %87 = tpu.matmul %80, %4, %cst_41 {dimension_numbers = #tpu.dot_dimension_numbers<[1], [0], [0], [1], [0, 0, 1, 1], [], []>} : vector<1x128xf32>, vector<128x128xf32>, vector<1x128xf32> -> vector<1x128xf32>
    %88 = arith.addf %20, %87 : vector<1x128xf32>
    %cst_42 = arith.constant 0.000000e+00 : f32
    %89 = vector.broadcast %cst_42 : f32 to vector<1x128xf32>
    %90 = arith.maximumf %88, %89 : vector<1x128xf32>
    %cst_43 = arith.constant dense<0.000000e+00> : vector<1x128xf32>
    %91 = tpu.matmul %90, %6, %cst_43 {dimension_numbers = #tpu.dot_dimension_numbers<[1], [0], [0], [1], [0, 0, 1, 1], [], []>} : vector<1x128xf32>, vector<128x128xf32>, vector<1x128xf32> -> vector<1x128xf32>
    %92 = arith.addf %91, %2 : vector<1x128xf32>
    %cst_44 = arith.constant dense<0.000000e+00> : vector<1x128xf32>
    %93 = tpu.matmul %86, %5, %cst_44 {dimension_numbers = #tpu.dot_dimension_numbers<[1], [0], [0], [1], [0, 0, 1, 1], [], []>} : vector<1x128xf32>, vector<128x128xf32>, vector<1x128xf32> -> vector<1x128xf32>
    %94 = arith.addf %82, %93 : vector<1x128xf32>
    %cst_45 = arith.constant 0.000000e+00 : f32
    %95 = vector.broadcast %cst_45 : f32 to vector<1x128xf32>
    %96 = arith.maximumf %94, %95 : vector<1x128xf32>
    %cst_46 = arith.constant dense<0.000000e+00> : vector<1x128xf32>
    %97 = tpu.matmul %96, %5, %cst_46 {dimension_numbers = #tpu.dot_dimension_numbers<[1], [0], [0], [1], [0, 0, 1, 1], [], []>} : vector<1x128xf32>, vector<128x128xf32>, vector<1x128xf32> -> vector<1x128xf32>
    %98 = arith.addf %92, %97 : vector<1x128xf32>
    %cst_47 = arith.constant 0.000000e+00 : f32
    %99 = vector.broadcast %cst_47 : f32 to vector<1x128xf32>
    %100 = arith.maximumf %98, %99 : vector<1x128xf32>
    %101 = tpu.concatenate %90, %100 in 0 : vector<1x128xf32>, vector<1x128xf32> -> vector<2x128xf32>
    %102 = vector.extract_strided_slice %101 {offsets = [0, 0], sizes = [2, 32], strides = [1, 1]} : vector<2x128xf32> to vector<2x32xf32>
    %c0_48 = arith.constant 0 : index
    %c0_49 = arith.constant 0 : index
    %103 = vector.load %arg3[%c0_48, %c0_49] : memref<2x32xf32, #tpu.memory_space<vmem>>, vector<2x32xf32>
    tpu.vector_store %arg3[%c0_48, %c0_49], %102 {strides = array<i32>} : memref<2x32xf32, #tpu.memory_space<vmem>>, vector<2x32xf32>,
    %c400 = arith.constant 400 : index
    %c0_50 = arith.constant 0 : index
    %104 = vector.load %arg1[%c400, %c0_50] : memref<536x128xf32, #tpu.memory_space<vmem>>, vector<128x128xf32>
    %cst_51 = arith.constant dense<0.000000e+00> : vector<1x128xf32>
    %105 = tpu.matmul %100, %104, %cst_51 {dimension_numbers = #tpu.dot_dimension_numbers<[1], [0], [0], [1], [0, 0, 1, 1], [], []>} : vector<1x128xf32>, vector<128x128xf32>, vector<1x128xf32> -> vector<1x128xf32>
    %106 = arith.addf %105, %3 : vector<1x128xf32>
    %107 = tpu.iota {dimensions = array<i32: 1>} : vector<1x128xi32>
    %c8_i32 = arith.constant 8 : i32
    %108 = vector.broadcast %c8_i32 : i32 to vector<1x128xi32>
    %109 = arith.cmpi slt, %107, %108 : vector<1x128xi32>
    %cst_52 = arith.constant -1.000000e+30 : f32
    %110 = vector.broadcast %cst_52 : f32 to vector<1x128xf32>
    %111 = arith.select %109, %106, %110 : vector<1x128xi1>, vector<1x128xf32>
    %cst_53 = arith.constant dense<0xFF800000> : vector<1xf32>
    %112 = vector.multi_reduction <maximumf>, %111, %cst_53 [1] : vector<1x128xf32> to vector<1xf32>
    %113 = vector.shape_cast %112 : vector<1xf32> to vector<1x1xf32>
    %114 = vector.broadcast %113 : vector<1x1xf32> to vector<1x128xf32>
    %115 = arith.subf %111, %114 : vector<1x128xf32>
    %116 = math.exp %115 : vector<1x128xf32>
    %cst_54 = arith.constant dense<0.000000e+00> : vector<1xf32>
    %117 = vector.multi_reduction <add>, %116, %cst_54 [1] : vector<1x128xf32> to vector<1xf32>
    %118 = vector.shape_cast %117 : vector<1xf32> to vector<1x1xf32>
    %119 = math.log %118 : vector<1x1xf32>
    %120 = vector.broadcast %119 : vector<1x1xf32> to vector<1x128xf32>
    %121 = arith.subf %115, %120 : vector<1x128xf32>
    %122 = vector.extract_strided_slice %121 {offsets = [0, 0], sizes = [1, 8], strides = [1, 1]} : vector<1x128xf32> to vector<1x8xf32>
    %c0_55 = arith.constant 0 : index
    %c0_56 = arith.constant 0 : index
    %123 = vector.load %arg2[%c0_55, %c0_56] : memref<1x8xf32, #tpu.memory_space<vmem>>, vector<1x8xf32>
    tpu.vector_store %arg2[%c0_55, %c0_56], %122 {strides = array<i32>} : memref<1x8xf32, #tpu.memory_space<vmem>>, vector<1x8xf32>,
    return
  }
}

</mosaic_0001>

<llo_original>
// kernel: tpu_custom_call.1
$region0: #{tpu_custom_call.1}
  #allocation0 [shape = 'u32[]', space=smem, size = 0x4, offset = 0x4, fixed_abs, tag = 'smem constant byte address 0x4 - core index']
  #allocation1 [shape = 'u32[144,128]{1,0:T(1,128)}', space=vmem, size = 0x12000, scoped, tag = 'internal scratch']
  %s0 = inlined_call_operand.hbm [shape: f32[8,16], index: 0, kind: input, shape index: {}]
  %s1 = inlined_call_operand.hbm [shape: f32[536,128], index: 1, kind: input, shape index: {}]
  %s2 = inlined_call_operand.hbm [shape: f32[1,8], index: 2, kind: output, shape index: {0}]
  %s3 = inlined_call_operand.hbm [shape: f32[2,32], index: 3, kind: output, shape index: {1}]
  %4 = xla_tuple %s2, %s3
  %s5 = sld [smem:[#allocation0]]
  $region34: #{tpu_custom_call.1} parent=0
    _
  %s7 = ssub.s32 1, %s5
  %s8 = scalar_select 0, %s7, %s5
  $region1: #{tpu_custom_call.1} parent=0
    #allocation2 [shape = 'u8[4096]{0}', space=vmem, size = 0x1000, scoped, tag = 'input window, operand 0, single buffered']
    #allocation3 [shape = 's32[1]{0}', space=sflag, size = 0x4, scoped, tag = 'scoped memory for tpu_custom_call.1']
    #allocation4 [shape = 's32[1]{0}', space=sflag, size = 0x4, scoped, tag = 'scoped memory for tpu_custom_call.1']
    #allocation5 [shape = 'u8[274432]{0}', space=vmem, size = 0x43000, scoped, tag = 'input window, operand 1, single buffered']
    #allocation6 [shape = 's32[1]{0}', space=sflag, size = 0x4, scoped, tag = 'scoped memory for tpu_custom_call.1']
    #allocation7 [shape = 'u8[512]{0}', space=vmem, size = 0x400, scoped, tag = 'output window, operand 0, single buffered']
    #allocation8 [shape = 'u8[1024]{0}', space=vmem, size = 0x400, scoped, tag = 'output window, operand 1, single buffered']
    #allocation9 [shape = 's32[1]{0}', space=sflag, size = 0x4, scoped, tag = 'scoped memory for tpu_custom_call.1']
    %9 = vsyncpa [#allocation3], 0
    %10 = vsyncpa [#allocation6], 0
    %11 = vsyncpa [#allocation4], 0
    %12 = vsyncpa [#allocation9], 0
    // Predicated region
    $region2: #{tpu_custom_call.1} parent=1 // pred_check
      _
    $region3: #{tpu_custom_call.1} parent=1 // pred_check_branch
      %14 = sbr.rel (0) target = $region5
    $region4: #{tpu_custom_call.1} parent=1 // pred_region
      %s16 = ssub.s32 128, 128
      %17 = vsyncadd [#allocation3], %s16
      %s19 = sshll.u32 [#allocation2], 4
      %s20 = int_to_ptr.vmem [resolvable:$true] %s19
      %22 = dma.hbm_to_vmem [thread:$0]  %s0, 128, %s20, [#allocation3]
    $region5: #{tpu_custom_call.1} parent=1 // pred_fallthru
      _
    // Predicated region
    $region6: #{tpu_custom_call.1} parent=1 // pred_check
      _
    $region7: #{tpu_custom_call.1} parent=1 // pred_check_branch
      %24 = sbr.rel (0) target = $region9
    $region8: #{tpu_custom_call.1} parent=1 // pred_region
      %s26 = ssub.s32 8576, 8576
      %27 = vsyncadd [#allocation6], %s26
      %s28 = sshll.u32 [#allocation5], 4
      %s29 = int_to_ptr.vmem [resolvable:$true] %s28
      %34 = dma.hbm_to_vmem [thread:$0]  %s1, 8576, %s29, [#allocation6], 128, 128, 8
    $region9: #{tpu_custom_call.1} parent=1 // pred_fallthru
      _
    // Predicated region
    $region10: #{tpu_custom_call.1} parent=1 // pred_check
      _
    $region11: #{tpu_custom_call.1} parent=1 // pred_check_branch
      %36 = sbr.rel (0) target = $region13
    $region12: #{tpu_custom_call.1} parent=1 // pred_region
      %37 = dma.done [#allocation3], 128
    $region13: #{tpu_custom_call.1} parent=1 // pred_fallthru
      _
    // Predicated region
    $region14: #{tpu_custom_call.1} parent=1 // pred_check
      _
    $region15: #{tpu_custom_call.1} parent=1 // pred_check_branch
      %39 = sbr.rel (0) target = $region17
    $region16: #{tpu_custom_call.1} parent=1 // pred_region
      %40 = dma.done [#allocation6], 8576
    $region17: #{tpu_custom_call.1} parent=1 // pred_fallthru
      _
    %v41 = vld [vmem:[#allocation5 + $0x210] sm:$0xff]
    %v42 = vld [vmem:[#allocation5 + $0x90] sm:$0xff]
    %v43 = vld [vmem:[#allocation5 + $0x98] sm:$0xff]
    %v44 = vld [vmem:[#allocation5 + $0xa0] sm:$0xff]
    %v45 = vld [vmem:[#allocation5 + $0xa8] sm:$0xff]
    %v46 = vld [vmem:[#allocation5 + $0xb0] sm:$0xff]
    %v47 = vld [vmem:[#allocation5 + $0xb8] sm:$0xff]
    %v48 = vld [vmem:[#allocation5 + $0xc0] sm:$0xff]
    %v49 = vld [vmem:[#allocation5 + $0xc8] sm:$0xff]
    %v50 = vld [vmem:[#allocation5 + $0xd0] sm:$0xff]
    %v51 = vld [vmem:[#allocation5 + $0xd8] sm:$0xff]
    %v52 = vld [vmem:[#allocation5 + $0xe0] sm:$0xff]
    %v53 = vld [vmem:[#allocation5 + $0xe8] sm:$0xff]
    %v54 = vld [vmem:[#allocation5 + $0xf0] sm:$0xff]
    %v55 = vld [vmem:[#allocation5 + $0xf8] sm:$0xff]
    %v56 = vld [vmem:[#allocation5 + $0x100] sm:$0xff]
    %v57 = vld [vmem:[#allocation5 + $0x108] sm:$0xff]
    %v58 = vld [vmem:[#allocation5 + $0x110] sm:$0xff]
    %v59 = vld [vmem:[#allocation5 + $0x118] sm:$0xff]
    %v60 = vld [vmem:[#allocation5 + $0x120] sm:$0xff]
    %v61 = vld [vmem:[#allocation5 + $0x128] sm:$0xff]
    %v62 = vld [vmem:[#allocation5 + $0x130] sm:$0xff]
    %v63 = vld [vmem:[#allocation5 + $0x138] sm:$0xff]
    %v64 = vld [vmem:[#allocation5 + $0x140] sm:$0xff]
    %v65 = vld [vmem:[#allocation5 + $0x148] sm:$0xff]
    %v66 = vld [vmem:[#allocation5 + $0x150] sm:$0xff]
    %v67 = vld [vmem:[#allocation5 + $0x158] sm:$0xff]
    %v68 = vld [vmem:[#allocation5 + $0x160] sm:$0xff]
    %v69 = vld [vmem:[#allocation5 + $0x168] sm:$0xff]
    %v70 = vld [vmem:[#allocation5 + $0x170] sm:$0xff]
    %v71 = vld [vmem:[#allocation5 + $0x178] sm:$0xff]
    %v72 = vld [vmem:[#allocation5 + $0x180] sm:$0xff]
    %v73 = vld [vmem:[#allocation5 + $0x188] sm:$0xff]
    %v74 = vld [vmem:[#allocation5 + $0x10] sm:$0xff]
    %v75 = vld [vmem:[#allocation5 + $0x18] sm:$0xff]
    %v76 = vld [vmem:[#allocation5 + $0x20] sm:$0xff]
    %v77 = vld [vmem:[#allocation5 + $0x28] sm:$0xff]
    %v78 = vld [vmem:[#allocation5 + $0x30] sm:$0xff]
    %v79 = vld [vmem:[#allocation5 + $0x38] sm:$0xff]
    %v80 = vld [vmem:[#allocation5 + $0x40] sm:$0xff]
    %v81 = vld [vmem:[#allocation5 + $0x48] sm:$0xff]
    %v82 = vld [vmem:[#allocation5 + $0x50] sm:$0xff]
    %v83 = vld [vmem:[#allocation5 + $0x58] sm:$0xff]
    %v84 = vld [vmem:[#allocation5 + $0x60] sm:$0xff]
    %v85 = vld [vmem:[#allocation5 + $0x68] sm:$0xff]
    %v86 = vld [vmem:[#allocation5 + $0x70] sm:$0xff]
    %v87 = vld [vmem:[#allocation5 + $0x78] sm:$0xff]
    %v88 = vld [vmem:[#allocation5 + $0x80] sm:$0xff]
    %v89 = vld [vmem:[#allocation5 + $0x88] sm:$0xff]
    %v90 = vld [vmem:[#allocation2] sm:$0xff]
    %v91 = vld [vmem:[#allocation5] sm:$0xff]
    %v92 = vld [vmem:[#allocation5 + $0x8] sm:$0xff]
    %v93 = vlaneseq
    %v94 = vshrl.u32 %v93, 7
    %v95 = vsub.s32 0, %v94
    %v96 = vrot.slane %v41, %v95
    %vm97 = vcmask 130048
    %v99 = vsel %vm97, %v90, 0
    %101 = vmatprep.subr.mxu0 0.0
    %102 = vmatpush1.msra.mxu0 0.0
    %103 = vmatprep.subr.mxu0 0.0
    %104 = vmatpush1.msra.mxu0 0.0
    %105 = vmatprep.subr.mxu0 0.0
    %106 = vmatpush1.msra.mxu0 0.0
    %107 = vmatprep.subr.mxu0 0.0
    %108 = vmatpush1.msra.mxu0 0.0
    %109 = vmatprep.subr.mxu0 0.0
    %110 = vmatpush1.msra.mxu0 0.0
    %111 = vmatprep.subr.mxu0 0.0
    %112 = vmatpush1.msra.mxu0 0.0
    %113 = vmatprep.subr.mxu0 0.0
    %114 = vmatpush1.msra.mxu0 0.0
    %115 = vmatprep.subr.mxu0 0.0
    %116 = vmatpush1.msra.mxu0 0.0
    %117 = vmatprep.subr.mxu0 0.0
    %118 = vmatpush1.msra.mxu0 0.0
    %119 = vmatprep.subr.mxu0 0.0
    %120 = vmatpush1.msra.mxu0 0.0
    %121 = vmatprep.subr.mxu0 0.0
    %122 = vmatpush1.msra.mxu0 0.0
    %123 = vmatprep.subr.mxu0 0.0
    %124 = vmatpush1.msra.mxu0 0.0
    %125 = vmatprep.subr.mxu0 0.0
    %126 = vmatpush1.msra.mxu0 0.0
    %127 = vmatprep.subr.mxu0 0.0
    %128 = vmatpush1.msra.mxu0 0.0
    %129 = vmatprep.subr.mxu0 0.0
    %130 = vmatpush1.msra.mxu0 %v92
    %131 = vmatprep.subr.mxu0 0.0
    %132 = vmatpush1.msra.mxu0 %v91
    %133 = vmatprep.subr.mxu0 0.0
    %134 = vmatpush2.msra.mxu0 0.0
    %135 = vmatprep.subr.mxu0 0.0
    %136 = vmatpush2.msra.mxu0 0.0
    %137 = vmatprep.subr.mxu0 0.0
    %138 = vmatpush2.msra.mxu0 0.0
    %139 = vmatprep.subr.mxu0 0.0
    %140 = vmatpush2.msra.mxu0 0.0
    %141 = vmatprep.subr.mxu0 0.0
    %142 = vmatpush2.msra.mxu0 0.0
    %143 = vmatprep.subr.mxu0 0.0
    %144 = vmatpush2.msra.mxu0 0.0
    %145 = vmatprep.subr.mxu0 0.0
    %146 = vmatpush2.msra.mxu0 0.0
    %147 = vmatprep.subr.mxu0 0.0
    %148 = vmatpush2.msra.mxu0 0.0
    %149 = vmatprep.subr.mxu0 0.0
    %150 = vmatpush2.msra.mxu0 0.0
    %151 = vmatprep.subr.mxu0 0.0
    %152 = vmatpush2.msra.mxu0 0.0
    %153 = vmatprep.subr.mxu0 0.0
    %154 = vmatpush2.msra.mxu0 0.0
    %155 = vmatprep.subr.mxu0 0.0
    %156 = vmatpush2.msra.mxu0 0.0
    %157 = vmatprep.subr.mxu0 0.0
    %158 = vmatpush2.msra.mxu0 0.0
    %159 = vmatprep.subr.mxu0 0.0
    %160 = vmatpush2.msra.mxu0 0.0
    %161 = vmatprep.subr.mxu0 0.0
    %162 = vmatpush2.msra.mxu0 0.0
    %163 = vmatprep.subr.mxu0 0.0
    %164 = vmatpush2.msra.mxu0 0.0
    %165 = vmatprep.mubr.f32.mxu0 0.0
    %166 = vmatmul.mubr.f32.gmra.mxu0 %v99
    %v167 = vpop.f32.mrf.mxu0
    %v168 = vadd.f32 %v96, %v167
    %v169 = vpop.f32.mrf.mxu0
    %170 = vdwg.mxu0
    %171 = vmatprep.subr.mxu0 0.0
    %172 = vmatpush1.msra.mxu0 %v57
    %173 = vmatprep.subr.mxu0 0.0
    %174 = vmatpush1.msra.mxu0 %v56
    %175 = vmatprep.subr.mxu0 0.0
    %176 = vmatpush1.msra.mxu0 %v55
    %177 = vmatprep.subr.mxu0 0.0
    %178 = vmatpush1.msra.mxu0 %v54
    %179 = vmatprep.subr.mxu0 0.0
    %180 = vmatpush1.msra.mxu0 %v53
    %181 = vmatprep.subr.mxu0 0.0
    %182 = vmatpush1.msra.mxu0 %v52
    %183 = vmatprep.subr.mxu0 0.0
    %184 = vmatpush1.msra.mxu0 %v51
    %185 = vmatprep.subr.mxu0 0.0
    %186 = vmatpush1.msra.mxu0 %v50
    %187 = vmatprep.subr.mxu0 0.0
    %188 = vmatpush1.msra.mxu0 %v49
    %189 = vmatprep.subr.mxu0 0.0
    %190 = vmatpush1.msra.mxu0 %v48
    %191 = vmatprep.subr.mxu0 0.0
    %192 = vmatpush1.msra.mxu0 %v47
    %193 = vmatprep.subr.mxu0 0.0
    %194 = vmatpush1.msra.mxu0 %v46
    %195 = vmatprep.subr.mxu0 0.0
    %196 = vmatpush1.msra.mxu0 %v45
    %197 = vmatprep.subr.mxu0 0.0
    %198 = vmatpush1.msra.mxu0 %v44
    %199 = vmatprep.subr.mxu0 0.0
    %200 = vmatpush1.msra.mxu0 %v43
    %201 = vmatprep.subr.mxu0 0.0
    %202 = vmatpush1.msra.mxu0 %v42
    %203 = vmatprep.subr.mxu0 0.0
    %204 = vmatpush2.msra.mxu0 0.0
    %205 = vmatprep.subr.mxu0 0.0
    %206 = vmatpush2.msra.mxu0 0.0
    %207 = vmatprep.subr.mxu0 0.0
    %208 = vmatpush2.msra.mxu0 0.0
    %209 = vmatprep.subr.mxu0 0.0
    %210 = vmatpush2.msra.mxu0 0.0
    %211 = vmatprep.subr.mxu0 0.0
    %212 = vmatpush2.msra.mxu0 0.0
    %213 = vmatprep.subr.mxu0 0.0
    %214 = vmatpush2.msra.mxu0 0.0
    %215 = vmatprep.subr.mxu0 0.0
    %216 = vmatpush2.msra.mxu0 0.0
    %217 = vmatprep.subr.mxu0 0.0
    %218 = vmatpush2.msra.mxu0 0.0
    %219 = vmatprep.subr.mxu0 0.0
    %220 = vmatpush2.msra.mxu0 0.0
    %221 = vmatprep.subr.mxu0 0.0
    %222 = vmatpush2.msra.mxu0 0.0
    %223 = vmatprep.subr.mxu0 0.0
    %224 = vmatpush2.msra.mxu0 0.0
    %225 = vmatprep.subr.mxu0 0.0
    %226 = vmatpush2.msra.mxu0 0.0
    %227 = vmatprep.subr.mxu0 0.0
    %228 = vmatpush2.msra.mxu0 0.0
    %229 = vmatprep.subr.mxu0 0.0
    %230 = vmatpush2.msra.mxu0 0.0
    %231 = vmatprep.subr.mxu0 0.0
    %232 = vmatpush2.msra.mxu0 0.0
    %233 = vmatprep.subr.mxu0 0.0
    %234 = vmatpush2.msra.mxu0 0.0
    %235 = vmatprep.mubr.f32.mxu0 0.0
    %236 = vmatmul.mubr.f32.gmra.mxu0 0.0
    %v237 = vpop.f32.mrf.mxu0
    %v238 = vadd.f32 0.0, %v237
    %v239 = vpop.f32.mrf.mxu0
    %240 = vdwg.mxu0
    %v241 = vadd.f32 %v168, %v238
    %v242 = vmax.f32 %v241, 0.0
    %v244 = vrot.slane %v41, 1
    %246 = vmatprep.subr.mxu0 0.0
    %247 = vmatpush1.msra.mxu0 %v89
    %248 = vmatprep.subr.mxu0 0.0
    %249 = vmatpush1.msra.mxu0 %v88
    %250 = vmatprep.subr.mxu0 0.0
    %251 = vmatpush1.msra.mxu0 %v87
    %252 = vmatprep.subr.mxu0 0.0
    %253 = vmatpush1.msra.mxu0 %v86
    %254 = vmatprep.subr.mxu0 0.0
    %255 = vmatpush1.msra.mxu0 %v85
    %256 = vmatprep.subr.mxu0 0.0
    %257 = vmatpush1.msra.mxu0 %v84
    %258 = vmatprep.subr.mxu0 0.0
    %259 = vmatpush1.msra.mxu0 %v83
    %260 = vmatprep.subr.mxu0 0.0
    %261 = vmatpush1.msra.mxu0 %v82
    %262 = vmatprep.subr.mxu0 0.0
    %263 = vmatpush1.msra.mxu0 %v81
    %264 = vmatprep.subr.mxu0 0.0
    %265 = vmatpush1.msra.mxu0 %v80
    %266 = vmatprep.subr.mxu0 0.0
    %267 = vmatpush1.msra.mxu0 %v79
    %268 = vmatprep.subr.mxu0 0.0
    %269 = vmatpush1.msra.mxu0 %v78
    %270 = vmatprep.subr.mxu0 0.0
    %271 = vmatpush1.msra.mxu0 %v77
    %272 = vmatprep.subr.mxu0 0.0
    %273 = vmatpush1.msra.mxu0 %v76
    %274 = vmatprep.subr.mxu0 0.0
    %275 = vmatpush1.msra.mxu0 %v75
    %276 = vmatprep.subr.mxu0 0.0
    %277 = vmatpush1.msra.mxu0 %v74
    %278 = vmatprep.subr.mxu0 0.0
    %279 = vmatpush2.msra.mxu0 0.0
    %280 = vmatprep.subr.mxu0 0.0
    %281 = vmatpush2.msra.mxu0 0.0
    %282 = vmatprep.subr.mxu0 0.0
    %283 = vmatpush2.msra.mxu0 0.0
    %284 = vmatprep.subr.mxu0 0.0
    %285 = vmatpush2.msra.mxu0 0.0
    %286 = vmatprep.subr.mxu0 0.0
    %287 = vmatpush2.msra.mxu0 0.0
    %288 = vmatprep.subr.mxu0 0.0
    %289 = vmatpush2.msra.mxu0 0.0
    %290 = vmatprep.subr.mxu0 0.0
    %291 = vmatpush2.msra.mxu0 0.0
    %292 = vmatprep.subr.mxu0 0.0
    %293 = vmatpush2.msra.mxu0 0.0
    %294 = vmatprep.subr.mxu0 0.0
    %295 = vmatpush2.msra.mxu0 0.0
    %296 = vmatprep.subr.mxu0 0.0
    %297 = vmatpush2.msra.mxu0 0.0
    %298 = vmatprep.subr.mxu0 0.0
    %299 = vmatpush2.msra.mxu0 0.0
    %300 = vmatprep.subr.mxu0 0.0
    %301 = vmatpush2.msra.mxu0 0.0
    %302 = vmatprep.subr.mxu0 0.0
    %303 = vmatpush2.msra.mxu0 0.0
    %304 = vmatprep.subr.mxu0 0.0
    %305 = vmatpush2.msra.mxu0 0.0
    %306 = vmatprep.subr.mxu0 0.0
    %307 = vmatpush2.msra.mxu0 0.0
    %308 = vmatprep.subr.mxu0 0.0
    %309 = vmatpush2.msra.mxu0 0.0
    %310 = vmatprep.mubr.f32.mxu0 0.0
    %311 = vmatmul.mubr.f32.gmra.mxu0 %v242
    %v312 = vpop.f32.mrf.mxu0
    %v313 = vadd.f32 %v244, %v312
    %v314 = vpop.f32.mrf.mxu0
    %315 = vdwg.mxu0
    %316 = vmatprep.subr.mxu0 0.0
    %317 = vmatpush1.msra.mxu0 %v57
    %318 = vmatprep.subr.mxu0 0.0
    %319 = vmatpush1.msra.mxu0 %v56
    %320 = vmatprep.subr.mxu0 0.0
    %321 = vmatpush1.msra.mxu0 %v55
    %322 = vmatprep.subr.mxu0 0.0
    %323 = vmatpush1.msra.mxu0 %v54
    %324 = vmatprep.subr.mxu0 0.0
    %325 = vmatpush1.msra.mxu0 %v53
    %326 = vmatprep.subr.mxu0 0.0
    %327 = vmatpush1.msra.mxu0 %v52
    %328 = vmatprep.subr.mxu0 0.0
    %329 = vmatpush1.msra.mxu0 %v51
    %330 = vmatprep.subr.mxu0 0.0
    %331 = vmatpush1.msra.mxu0 %v50
    %332 = vmatprep.subr.mxu0 0.0
    %333 = vmatpush1.msra.mxu0 %v49
    %334 = vmatprep.subr.mxu0 0.0
    %335 = vmatpush1.msra.mxu0 %v48
    %336 = vmatprep.subr.mxu0 0.0
    %337 = vmatpush1.msra.mxu0 %v47
    %338 = vmatprep.subr.mxu0 0.0
    %339 = vmatpush1.msra.mxu0 %v46
    %340 = vmatprep.subr.mxu0 0.0
    %341 = vmatpush1.msra.mxu0 %v45
    %342 = vmatprep.subr.mxu0 0.0
    %343 = vmatpush1.msra.mxu0 %v44
    %344 = vmatprep.subr.mxu0 0.0
    %345 = vmatpush1.msra.mxu0 %v43
    %346 = vmatprep.subr.mxu0 0.0
    %347 = vmatpush1.msra.mxu0 %v42
    %348 = vmatprep.subr.mxu0 0.0
    %349 = vmatpush2.msra.mxu0 0.0
    %350 = vmatprep.subr.mxu0 0.0
    %351 = vmatpush2.msra.mxu0 0.0
    %352 = vmatprep.subr.mxu0 0.0
    %353 = vmatpush2.msra.mxu0 0.0
    %354 = vmatprep.subr.mxu0 0.0
    %355 = vmatpush2.msra.mxu0 0.0
    %356 = vmatprep.subr.mxu0 0.0
    %357 = vmatpush2.msra.mxu0 0.0
    %358 = vmatprep.subr.mxu0 0.0
    %359 = vmatpush2.msra.mxu0 0.0
    %360 = vmatprep.subr.mxu0 0.0
    %361 = vmatpush2.msra.mxu0 0.0
    %362 = vmatprep.subr.mxu0 0.0
    %363 = vmatpush2.msra.mxu0 0.0
    %364 = vmatprep.subr.mxu0 0.0
    %365 = vmatpush2.msra.mxu0 0.0
    %366 = vmatprep.subr.mxu0 0.0
    %367 = vmatpush2.msra.mxu0 0.0
    %368 = vmatprep.subr.mxu0 0.0
    %369 = vmatpush2.msra.mxu0 0.0
    %370 = vmatprep.subr.mxu0 0.0
    %371 = vmatpush2.msra.mxu0 0.0
    %372 = vmatprep.subr.mxu0 0.0
    %373 = vmatpush2.msra.mxu0 0.0
    %374 = vmatprep.subr.mxu0 0.0
    %375 = vmatpush2.msra.mxu0 0.0
    %376 = vmatprep.subr.mxu0 0.0
    %377 = vmatpush2.msra.mxu0 0.0
    %378 = vmatprep.subr.mxu0 0.0
    %379 = vmatpush2.msra.mxu0 0.0
    %380 = vmatprep.mubr.f32.mxu0 0.0
    %381 = vmatmul.mubr.f32.gmra.mxu0 %v242
    %v382 = vpop.f32.mrf.mxu0
    %v383 = vadd.f32 0.0, %v382
    %v384 = vpop.f32.mrf.mxu0
    %385 = vdwg.mxu0
    %v387 = vrot.slane %v383, 7
    %v389 = vadd.f32 %v168, %v387
    %v390 = vmax.f32 %v389, 0.0
    %v392 = vrot.slane %v390, 1
    %394 = vmatprep.subr.mxu0 0.0
    %395 = vmatpush1.msra.mxu0 %v89
    %396 = vmatprep.subr.mxu0 0.0
    %397 = vmatpush1.msra.mxu0 %v88
    %398 = vmatprep.subr.mxu0 0.0
    %399 = vmatpush1.msra.mxu0 %v87
    %400 = vmatprep.subr.mxu0 0.0
    %401 = vmatpush1.msra.mxu0 %v86
    %402 = vmatprep.subr.mxu0 0.0
    %403 = vmatpush1.msra.mxu0 %v85
    %404 = vmatprep.subr.mxu0 0.0
    %405 = vmatpush1.msra.mxu0 %v84
    %406 = vmatprep.subr.mxu0 0.0
    %407 = vmatpush1.msra.mxu0 %v83
    %408 = vmatprep.subr.mxu0 0.0
    %409 = vmatpush1.msra.mxu0 %v82
    %410 = vmatprep.subr.mxu0 0.0
    %411 = vmatpush1.msra.mxu0 %v81
    %412 = vmatprep.subr.mxu0 0.0
    %413 = vmatpush1.msra.mxu0 %v80
    %414 = vmatprep.subr.mxu0 0.0
    %415 = vmatpush1.msra.mxu0 %v79
    %416 = vmatprep.subr.mxu0 0.0
    %417 = vmatpush1.msra.mxu0 %v78
    %418 = vmatprep.subr.mxu0 0.0
    %419 = vmatpush1.msra.mxu0 %v77
    %420 = vmatprep.subr.mxu0 0.0
    %421 = vmatpush1.msra.mxu0 %v76
    %422 = vmatprep.subr.mxu0 0.0
    %423 = vmatpush1.msra.mxu0 %v75
    %424 = vmatprep.subr.mxu0 0.0
    %425 = vmatpush1.msra.mxu0 %v74
    %426 = vmatprep.subr.mxu0 0.0
    %427 = vmatpush2.msra.mxu0 0.0
    %428 = vmatprep.subr.mxu0 0.0
    %429 = vmatpush2.msra.mxu0 0.0
    %430 = vmatprep.subr.mxu0 0.0
    %431 = vmatpush2.msra.mxu0 0.0
    %432 = vmatprep.subr.mxu0 0.0
    %433 = vmatpush2.msra.mxu0 0.0
    %434 = vmatprep.subr.mxu0 0.0
    %435 = vmatpush2.msra.mxu0 0.0
    %436 = vmatprep.subr.mxu0 0.0
    %437 = vmatpush2.msra.mxu0 0.0
    %438 = vmatprep.subr.mxu0 0.0
    %439 = vmatpush2.msra.mxu0 0.0
    %440 = vmatprep.subr.mxu0 0.0
    %441 = vmatpush2.msra.mxu0 0.0
    %442 = vmatprep.subr.mxu0 0.0
    %443 = vmatpush2.msra.mxu0 0.0
    %444 = vmatprep.subr.mxu0 0.0
    %445 = vmatpush2.msra.mxu0 0.0
    %446 = vmatprep.subr.mxu0 0.0
    %447 = vmatpush2.msra.mxu0 0.0
    %448 = vmatprep.subr.mxu0 0.0
    %449 = vmatpush2.msra.mxu0 0.0
    %450 = vmatprep.subr.mxu0 0.0
    %451 = vmatpush2.msra.mxu0 0.0
    %452 = vmatprep.subr.mxu0 0.0
    %453 = vmatpush2.msra.mxu0 0.0
    %454 = vmatprep.subr.mxu0 0.0
    %455 = vmatpush2.msra.mxu0 0.0
    %456 = vmatprep.subr.mxu0 0.0
    %457 = vmatpush2.msra.mxu0 0.0
    %458 = vmatprep.mubr.f32.mxu0 0.0
    %459 = vmatmul.mubr.f32.gmra.mxu0 %v392
    %v460 = vpop.f32.mrf.mxu0
    %v461 = vadd.f32 %v244, %v460
    %v462 = vpop.f32.mrf.mxu0
    %463 = vdwg.mxu0
    %464 = vmatprep.subr.mxu0 0.0
    %465 = vmatpush1.msra.mxu0 %v73
    %466 = vmatprep.subr.mxu0 0.0
    %467 = vmatpush1.msra.mxu0 %v72
    %468 = vmatprep.subr.mxu0 0.0
    %469 = vmatpush1.msra.mxu0 %v71
    %470 = vmatprep.subr.mxu0 0.0
    %471 = vmatpush1.msra.mxu0 %v70
    %472 = vmatprep.subr.mxu0 0.0
    %473 = vmatpush1.msra.mxu0 %v69
    %474 = vmatprep.subr.mxu0 0.0
    %475 = vmatpush1.msra.mxu0 %v68
    %476 = vmatprep.subr.mxu0 0.0
    %477 = vmatpush1.msra.mxu0 %v67
    %478 = vmatprep.subr.mxu0 0.0
    %479 = vmatpush1.msra.mxu0 %v66
    %480 = vmatprep.subr.mxu0 0.0
    %481 = vmatpush1.msra.mxu0 %v65
    %482 = vmatprep.subr.mxu0 0.0
    %483 = vmatpush1.msra.mxu0 %v64
    %484 = vmatprep.subr.mxu0 0.0
    %485 = vmatpush1.msra.mxu0 %v63
    %486 = vmatprep.subr.mxu0 0.0
    %487 = vmatpush1.msra.mxu0 %v62
    %488 = vmatprep.subr.mxu0 0.0
    %489 = vmatpush1.msra.mxu0 %v61
    %490 = vmatprep.subr.mxu0 0.0
    %491 = vmatpush1.msra.mxu0 %v60
    %492 = vmatprep.subr.mxu0 0.0
    %493 = vmatpush1.msra.mxu0 %v59
    %494 = vmatprep.subr.mxu0 0.0
    %495 = vmatpush1.msra.mxu0 %v58
    %496 = vmatprep.subr.mxu0 0.0
    %497 = vmatpush2.msra.mxu0 0.0
    %498 = vmatprep.subr.mxu0 0.0
    %499 = vmatpush2.msra.mxu0 0.0
    %500 = vmatprep.subr.mxu0 0.0
    %501 = vmatpush2.msra.mxu0 0.0
    %502 = vmatprep.subr.mxu0 0.0
    %503 = vmatpush2.msra.mxu0 0.0
    %504 = vmatprep.subr.mxu0 0.0
    %505 = vmatpush2.msra.mxu0 0.0
    %506 = vmatprep.subr.mxu0 0.0
    %507 = vmatpush2.msra.mxu0 0.0
    %508 = vmatprep.subr.mxu0 0.0
    %509 = vmatpush2.msra.mxu0 0.0
    %510 = vmatprep.subr.mxu0 0.0
    %511 = vmatpush2.msra.mxu0 0.0
    %512 = vmatprep.subr.mxu0 0.0
    %513 = vmatpush2.msra.mxu0 0.0
    %514 = vmatprep.subr.mxu0 0.0
    %515 = vmatpush2.msra.mxu0 0.0
    %516 = vmatprep.subr.mxu0 0.0
    %517 = vmatpush2.msra.mxu0 0.0
    %518 = vmatprep.subr.mxu0 0.0
    %519 = vmatpush2.msra.mxu0 0.0
    %520 = vmatprep.subr.mxu0 0.0
    %521 = vmatpush2.msra.mxu0 0.0
    %522 = vmatprep.subr.mxu0 0.0
    %523 = vmatpush2.msra.mxu0 0.0
    %524 = vmatprep.subr.mxu0 0.0
    %525 = vmatpush2.msra.mxu0 0.0
    %526 = vmatprep.subr.mxu0 0.0
    %527 = vmatpush2.msra.mxu0 0.0
    %528 = vmatprep.mubr.f32.mxu0 0.0
    %529 = vmatmul.mubr.f32.gmra.mxu0 0.0
    %v530 = vpop.f32.mrf.mxu0
    %v531 = vadd.f32 0.0, %v530
    %v532 = vpop.f32.mrf.mxu0
    %533 = vdwg.mxu0
    %v534 = vadd.f32 %v313, %v531
    %v535 = vmax.f32 %v534, 0.0
    %536 = vmatprep.subr.mxu0 0.0
    %537 = vmatpush1.msra.mxu0 %v57
    %538 = vmatprep.subr.mxu0 0.0
    %539 = vmatpush1.msra.mxu0 %v56
    %540 = vmatprep.subr.mxu0 0.0
    %541 = vmatpush1.msra.mxu0 %v55
    %542 = vmatprep.subr.mxu0 0.0
    %543 = vmatpush1.msra.mxu0 %v54
    %544 = vmatprep.subr.mxu0 0.0
    %545 = vmatpush1.msra.mxu0 %v53
    %546 = vmatprep.subr.mxu0 0.0
    %547 = vmatpush1.msra.mxu0 %v52
    %548 = vmatprep.subr.mxu0 0.0
    %549 = vmatpush1.msra.mxu0 %v51
    %550 = vmatprep.subr.mxu0 0.0
    %551 = vmatpush1.msra.mxu0 %v50
    %552 = vmatprep.subr.mxu0 0.0
    %553 = vmatpush1.msra.mxu0 %v49
    %554 = vmatprep.subr.mxu0 0.0
    %555 = vmatpush1.msra.mxu0 %v48
    %556 = vmatprep.subr.mxu0 0.0
    %557 = vmatpush1.msra.mxu0 %v47
    %558 = vmatprep.subr.mxu0 0.0
    %559 = vmatpush1.msra.mxu0 %v46
    %560 = vmatprep.subr.mxu0 0.0
    %561 = vmatpush1.msra.mxu0 %v45
    %562 = vmatprep.subr.mxu0 0.0
    %563 = vmatpush1.msra.mxu0 %v44
    %564 = vmatprep.subr.mxu0 0.0
    %565 = vmatpush1.msra.mxu0 %v43
    %566 = vmatprep.subr.mxu0 0.0
    %567 = vmatpush1.msra.mxu0 %v42
    %568 = vmatprep.subr.mxu0 0.0
    %569 = vmatpush2.msra.mxu0 0.0
    %570 = vmatprep.subr.mxu0 0.0
    %571 = vmatpush2.msra.mxu0 0.0
    %572 = vmatprep.subr.mxu0 0.0
    %573 = vmatpush2.msra.mxu0 0.0
    %574 = vmatprep.subr.mxu0 0.0
    %575 = vmatpush2.msra.mxu0 0.0
    %576 = vmatprep.subr.mxu0 0.0
    %577 = vmatpush2.msra.mxu0 0.0
    %578 = vmatprep.subr.mxu0 0.0
    %579 = vmatpush2.msra.mxu0 0.0
    %580 = vmatprep.subr.mxu0 0.0
    %581 = vmatpush2.msra.mxu0 0.0
    %582 = vmatprep.subr.mxu0 0.0
    %583 = vmatpush2.msra.mxu0 0.0
    %584 = vmatprep.subr.mxu0 0.0
    %585 = vmatpush2.msra.mxu0 0.0
    %586 = vmatprep.subr.mxu0 0.0
    %587 = vmatpush2.msra.mxu0 0.0
    %588 = vmatprep.subr.mxu0 0.0
    %589 = vmatpush2.msra.mxu0 0.0
    %590 = vmatprep.subr.mxu0 0.0
    %591 = vmatpush2.msra.mxu0 0.0
    %592 = vmatprep.subr.mxu0 0.0
    %593 = vmatpush2.msra.mxu0 0.0
    %594 = vmatprep.subr.mxu0 0.0
    %595 = vmatpush2.msra.mxu0 0.0
    %596 = vmatprep.subr.mxu0 0.0
    %597 = vmatpush2.msra.mxu0 0.0
    %598 = vmatprep.subr.mxu0 0.0
    %599 = vmatpush2.msra.mxu0 0.0
    %600 = vmatprep.mubr.f32.mxu0 0.0
    %601 = vmatmul.mubr.f32.gmra.mxu0 %v392
    %v602 = vpop.f32.mrf.mxu0
    %v603 = vadd.f32 0.0, %v602
    %v604 = vpop.f32.mrf.mxu0
    %605 = vdwg.mxu0
    %v607 = vrot.slane %v603, 6
    %v609 = vadd.f32 %v168, %v607
    %v610 = vmax.f32 %v609, 0.0
    %v612 = vrot.slane %v610, 2
    %614 = vmatprep.subr.mxu0 0.0
    %615 = vmatpush1.msra.mxu0 %v89
    %616 = vmatprep.subr.mxu0 0.0
    %617 = vmatpush1.msra.mxu0 %v88
    %618 = vmatprep.subr.mxu0 0.0
    %619 = vmatpush1.msra.mxu0 %v87
    %620 = vmatprep.subr.mxu0 0.0
    %621 = vmatpush1.msra.mxu0 %v86
    %622 = vmatprep.subr.mxu0 0.0
    %623 = vmatpush1.msra.mxu0 %v85
    %624 = vmatprep.subr.mxu0 0.0
    %625 = vmatpush1.msra.mxu0 %v84
    %626 = vmatprep.subr.mxu0 0.0
    %627 = vmatpush1.msra.mxu0 %v83
    %628 = vmatprep.subr.mxu0 0.0
    %629 = vmatpush1.msra.mxu0 %v82
    %630 = vmatprep.subr.mxu0 0.0
    %631 = vmatpush1.msra.mxu0 %v81
    %632 = vmatprep.subr.mxu0 0.0
    %633 = vmatpush1.msra.mxu0 %v80
    %634 = vmatprep.subr.mxu0 0.0
    %635 = vmatpush1.msra.mxu0 %v79
    %636 = vmatprep.subr.mxu0 0.0
    %637 = vmatpush1.msra.mxu0 %v78
    %638 = vmatprep.subr.mxu0 0.0
    %639 = vmatpush1.msra.mxu0 %v77
    %640 = vmatprep.subr.mxu0 0.0
    %641 = vmatpush1.msra.mxu0 %v76
    %642 = vmatprep.subr.mxu0 0.0
    %643 = vmatpush1.msra.mxu0 %v75
    %644 = vmatprep.subr.mxu0 0.0
    %645 = vmatpush1.msra.mxu0 %v74
    %646 = vmatprep.subr.mxu0 0.0
    %647 = vmatpush2.msra.mxu0 0.0
    %648 = vmatprep.subr.mxu0 0.0
    %649 = vmatpush2.msra.mxu0 0.0
    %650 = vmatprep.subr.mxu0 0.0
    %651 = vmatpush2.msra.mxu0 0.0
    %652 = vmatprep.subr.mxu0 0.0
    %653 = vmatpush2.msra.mxu0 0.0
    %654 = vmatprep.subr.mxu0 0.0
    %655 = vmatpush2.msra.mxu0 0.0
    %656 = vmatprep.subr.mxu0 0.0
    %657 = vmatpush2.msra.mxu0 0.0
    %658 = vmatprep.subr.mxu0 0.0
    %659 = vmatpush2.msra.mxu0 0.0
    %660 = vmatprep.subr.mxu0 0.0
    %661 = vmatpush2.msra.mxu0 0.0
    %662 = vmatprep.subr.mxu0 0.0
    %663 = vmatpush2.msra.mxu0 0.0
    %664 = vmatprep.subr.mxu0 0.0
    %665 = vmatpush2.msra.mxu0 0.0
    %666 = vmatprep.subr.mxu0 0.0
    %667 = vmatpush2.msra.mxu0 0.0
    %668 = vmatprep.subr.mxu0 0.0
    %669 = vmatpush2.msra.mxu0 0.0
    %670 = vmatprep.subr.mxu0 0.0
    %671 = vmatpush2.msra.mxu0 0.0
    %672 = vmatprep.subr.mxu0 0.0
    %673 = vmatpush2.msra.mxu0 0.0
    %674 = vmatprep.subr.mxu0 0.0
    %675 = vmatpush2.msra.mxu0 0.0
    %676 = vmatprep.subr.mxu0 0.0
    %677 = vmatpush2.msra.mxu0 0.0
    %678 = vmatprep.mubr.f32.mxu0 0.0
    %679 = vmatmul.mubr.f32.gmra.mxu0 %v612
    %v680 = vpop.f32.mrf.mxu0
    %v681 = vadd.f32 %v244, %v680
    %v682 = vpop.f32.mrf.mxu0
    %683 = vdwg.mxu0
    %684 = vmatprep.subr.mxu0 0.0
    %685 = vmatpush1.msra.mxu0 %v73
    %686 = vmatprep.subr.mxu0 0.0
    %687 = vmatpush1.msra.mxu0 %v72
    %688 = vmatprep.subr.mxu0 0.0
    %689 = vmatpush1.msra.mxu0 %v71
    %690 = vmatprep.subr.mxu0 0.0
    %691 = vmatpush1.msra.mxu0 %v70
    %692 = vmatprep.subr.mxu0 0.0
    %693 = vmatpush1.msra.mxu0 %v69
    %694 = vmatprep.subr.mxu0 0.0
    %695 = vmatpush1.msra.mxu0 %v68
    %696 = vmatprep.subr.mxu0 0.0
    %697 = vmatpush1.msra.mxu0 %v67
    %698 = vmatprep.subr.mxu0 0.0
    %699 = vmatpush1.msra.mxu0 %v66
    %700 = vmatprep.subr.mxu0 0.0
    %701 = vmatpush1.msra.mxu0 %v65
    %702 = vmatprep.subr.mxu0 0.0
    %703 = vmatpush1.msra.mxu0 %v64
    %704 = vmatprep.subr.mxu0 0.0
    %705 = vmatpush1.msra.mxu0 %v63
    %706 = vmatprep.subr.mxu0 0.0
    %707 = vmatpush1.msra.mxu0 %v62
    %708 = vmatprep.subr.mxu0 0.0
    %709 = vmatpush1.msra.mxu0 %v61
    %710 = vmatprep.subr.mxu0 0.0
    %711 = vmatpush1.msra.mxu0 %v60
    %712 = vmatprep.subr.mxu0 0.0
    %713 = vmatpush1.msra.mxu0 %v59
    %714 = vmatprep.subr.mxu0 0.0
    %715 = vmatpush1.msra.mxu0 %v58
    %716 = vmatprep.subr.mxu0 0.0
    %717 = vmatpush2.msra.mxu0 0.0
    %718 = vmatprep.subr.mxu0 0.0
    %719 = vmatpush2.msra.mxu0 0.0
    %720 = vmatprep.subr.mxu0 0.0
    %721 = vmatpush2.msra.mxu0 0.0
    %722 = vmatprep.subr.mxu0 0.0
    %723 = vmatpush2.msra.mxu0 0.0
    %724 = vmatprep.subr.mxu0 0.0
    %725 = vmatpush2.msra.mxu0 0.0
    %726 = vmatprep.subr.mxu0 0.0
    %727 = vmatpush2.msra.mxu0 0.0
    %728 = vmatprep.subr.mxu0 0.0
    %729 = vmatpush2.msra.mxu0 0.0
    %730 = vmatprep.subr.mxu0 0.0
    %731 = vmatpush2.msra.mxu0 0.0
    %732 = vmatprep.subr.mxu0 0.0
    %733 = vmatpush2.msra.mxu0 0.0
    %734 = vmatprep.subr.mxu0 0.0
    %735 = vmatpush2.msra.mxu0 0.0
    %736 = vmatprep.subr.mxu0 0.0
    %737 = vmatpush2.msra.mxu0 0.0
    %738 = vmatprep.subr.mxu0 0.0
    %739 = vmatpush2.msra.mxu0 0.0
    %740 = vmatprep.subr.mxu0 0.0
    %741 = vmatpush2.msra.mxu0 0.0
    %742 = vmatprep.subr.mxu0 0.0
    %743 = vmatpush2.msra.mxu0 0.0
    %744 = vmatprep.subr.mxu0 0.0
    %745 = vmatpush2.msra.mxu0 0.0
    %746 = vmatprep.subr.mxu0 0.0
    %747 = vmatpush2.msra.mxu0 0.0
    %748 = vmatprep.mubr.f32.mxu0 0.0
    %749 = vmatmul.mubr.f32.gmra.mxu0 %v535
    %v750 = vpop.f32.mrf.mxu0
    %v751 = vadd.f32 0.0, %v750
    %v752 = vpop.f32.mrf.mxu0
    %753 = vdwg.mxu0
    %v754 = vadd.f32 %v461, %v751
    %v755 = vmax.f32 %v754, 0.0
    %756 = vmatprep.subr.mxu0 0.0
    %757 = vmatpush1.msra.mxu0 %v57
    %758 = vmatprep.subr.mxu0 0.0
    %759 = vmatpush1.msra.mxu0 %v56
    %760 = vmatprep.subr.mxu0 0.0
    %761 = vmatpush1.msra.mxu0 %v55
    %762 = vmatprep.subr.mxu0 0.0
    %763 = vmatpush1.msra.mxu0 %v54
    %764 = vmatprep.subr.mxu0 0.0
    %765 = vmatpush1.msra.mxu0 %v53
    %766 = vmatprep.subr.mxu0 0.0
    %767 = vmatpush1.msra.mxu0 %v52
    %768 = vmatprep.subr.mxu0 0.0
    %769 = vmatpush1.msra.mxu0 %v51
    %770 = vmatprep.subr.mxu0 0.0
    %771 = vmatpush1.msra.mxu0 %v50
    %772 = vmatprep.subr.mxu0 0.0
    %773 = vmatpush1.msra.mxu0 %v49
    %774 = vmatprep.subr.mxu0 0.0
    %775 = vmatpush1.msra.mxu0 %v48
    %776 = vmatprep.subr.mxu0 0.0
    %777 = vmatpush1.msra.mxu0 %v47
    %778 = vmatprep.subr.mxu0 0.0
    %779 = vmatpush1.msra.mxu0 %v46
    %780 = vmatprep.subr.mxu0 0.0
    %781 = vmatpush1.msra.mxu0 %v45
    %782 = vmatprep.subr.mxu0 0.0
    %783 = vmatpush1.msra.mxu0 %v44
    %784 = vmatprep.subr.mxu0 0.0
    %785 = vmatpush1.msra.mxu0 %v43
    %786 = vmatprep.subr.mxu0 0.0
    %787 = vmatpush1.msra.mxu0 %v42
    %788 = vmatprep.subr.mxu0 0.0
    %789 = vmatpush2.msra.mxu0 0.0
    %790 = vmatprep.subr.mxu0 0.0
    %791 = vmatpush2.msra.mxu0 0.0
    %792 = vmatprep.subr.mxu0 0.0
    %793 = vmatpush2.msra.mxu0 0.0
    %794 = vmatprep.subr.mxu0 0.0
    %795 = vmatpush2.msra.mxu0 0.0
    %796 = vmatprep.subr.mxu0 0.0
    %797 = vmatpush2.msra.mxu0 0.0
    %798 = vmatprep.subr.mxu0 0.0
    %799 = vmatpush2.msra.mxu0 0.0
    %800 = vmatprep.subr.mxu0 0.0
    %801 = vmatpush2.msra.mxu0 0.0
    %802 = vmatprep.subr.mxu0 0.0
    %803 = vmatpush2.msra.mxu0 0.0
    %804 = vmatprep.subr.mxu0 0.0
    %805 = vmatpush2.msra.mxu0 0.0
    %806 = vmatprep.subr.mxu0 0.0
    %807 = vmatpush2.msra.mxu0 0.0
    %808 = vmatprep.subr.mxu0 0.0
    %809 = vmatpush2.msra.mxu0 0.0
    %810 = vmatprep.subr.mxu0 0.0
    %811 = vmatpush2.msra.mxu0 0.0
    %812 = vmatprep.subr.mxu0 0.0
    %813 = vmatpush2.msra.mxu0 0.0
    %814 = vmatprep.subr.mxu0 0.0
    %815 = vmatpush2.msra.mxu0 0.0
    %816 = vmatprep.subr.mxu0 0.0
    %817 = vmatpush2.msra.mxu0 0.0
    %818 = vmatprep.subr.mxu0 0.0
    %819 = vmatpush2.msra.mxu0 0.0
    %820 = vmatprep.mubr.f32.mxu0 0.0
    %821 = vmatmul.mubr.f32.gmra.mxu0 %v612
    %v822 = vpop.f32.mrf.mxu0
    %v823 = vadd.f32 0.0, %v822
    %v824 = vpop.f32.mrf.mxu0
    %825 = vdwg.mxu0
    %v827 = vrot.slane %v823, 5
    %v829 = vadd.f32 %v168, %v827
    %v830 = vmax.f32 %v829, 0.0
    %v832 = vrot.slane %v830, 3
    %834 = vmatprep.subr.mxu0 0.0
    %835 = vmatpush1.msra.mxu0 %v89
    %836 = vmatprep.subr.mxu0 0.0
    %837 = vmatpush1.msra.mxu0 %v88
    %838 = vmatprep.subr.mxu0 0.0
    %839 = vmatpush1.msra.mxu0 %v87
    %840 = vmatprep.subr.mxu0 0.0
    %841 = vmatpush1.msra.mxu0 %v86
    %842 = vmatprep.subr.mxu0 0.0
    %843 = vmatpush1.msra.mxu0 %v85
    %844 = vmatprep.subr.mxu0 0.0
    %845 = vmatpush1.msra.mxu0 %v84
    %846 = vmatprep.subr.mxu0 0.0
    %847 = vmatpush1.msra.mxu0 %v83
    %848 = vmatprep.subr.mxu0 0.0
    %849 = vmatpush1.msra.mxu0 %v82
    %850 = vmatprep.subr.mxu0 0.0
    %851 = vmatpush1.msra.mxu0 %v81
    %852 = vmatprep.subr.mxu0 0.0
    %853 = vmatpush1.msra.mxu0 %v80
    %854 = vmatprep.subr.mxu0 0.0
    %855 = vmatpush1.msra.mxu0 %v79
    %856 = vmatprep.subr.mxu0 0.0
    %857 = vmatpush1.msra.mxu0 %v78
    %858 = vmatprep.subr.mxu0 0.0
    %859 = vmatpush1.msra.mxu0 %v77
    %860 = vmatprep.subr.mxu0 0.0
    %861 = vmatpush1.msra.mxu0 %v76
    %862 = vmatprep.subr.mxu0 0.0
    %863 = vmatpush1.msra.mxu0 %v75
    %864 = vmatprep.subr.mxu0 0.0
    %865 = vmatpush1.msra.mxu0 %v74
    %866 = vmatprep.subr.mxu0 0.0
    %867 = vmatpush2.msra.mxu0 0.0
    %868 = vmatprep.subr.mxu0 0.0
    %869 = vmatpush2.msra.mxu0 0.0
    %870 = vmatprep.subr.mxu0 0.0
    %871 = vmatpush2.msra.mxu0 0.0
    %872 = vmatprep.subr.mxu0 0.0
    %873 = vmatpush2.msra.mxu0 0.0
    %874 = vmatprep.subr.mxu0 0.0
    %875 = vmatpush2.msra.mxu0 0.0
    %876 = vmatprep.subr.mxu0 0.0
    %877 = vmatpush2.msra.mxu0 0.0
    %878 = vmatprep.subr.mxu0 0.0
    %879 = vmatpush2.msra.mxu0 0.0
    %880 = vmatprep.subr.mxu0 0.0
    %881 = vmatpush2.msra.mxu0 0.0
    %882 = vmatprep.subr.mxu0 0.0
    %883 = vmatpush2.msra.mxu0 0.0
    %884 = vmatprep.subr.mxu0 0.0
    %885 = vmatpush2.msra.mxu0 0.0
    %886 = vmatprep.subr.mxu0 0.0
    %887 = vmatpush2.msra.mxu0 0.0
    %888 = vmatprep.subr.mxu0 0.0
    %889 = vmatpush2.msra.mxu0 0.0
    %890 = vmatprep.subr.mxu0 0.0
    %891 = vmatpush2.msra.mxu0 0.0
    %892 = vmatprep.subr.mxu0 0.0
    %893 = vmatpush2.msra.mxu0 0.0
    %894 = vmatprep.subr.mxu0 0.0
    %895 = vmatpush2.msra.mxu0 0.0
    %896 = vmatprep.subr.mxu0 0.0
    %897 = vmatpush2.msra.mxu0 0.0
    %898 = vmatprep.mubr.f32.mxu0 0.0
    %899 = vmatmul.mubr.f32.gmra.mxu0 %v832
    %v900 = vpop.f32.mrf.mxu0
    %v901 = vadd.f32 %v244, %v900
    %v902 = vpop.f32.mrf.mxu0
    %903 = vdwg.mxu0
    %904 = vmatprep.subr.mxu0 0.0
    %905 = vmatpush1.msra.mxu0 %v73
    %906 = vmatprep.subr.mxu0 0.0
    %907 = vmatpush1.msra.mxu0 %v72
    %908 = vmatprep.subr.mxu0 0.0
    %909 = vmatpush1.msra.mxu0 %v71
    %910 = vmatprep.subr.mxu0 0.0
    %911 = vmatpush1.msra.mxu0 %v70
    %912 = vmatprep.subr.mxu0 0.0
    %913 = vmatpush1.msra.mxu0 %v69
    %914 = vmatprep.subr.mxu0 0.0
    %915 = vmatpush1.msra.mxu0 %v68
    %916 = vmatprep.subr.mxu0 0.0
    %917 = vmatpush1.msra.mxu0 %v67
    %918 = vmatprep.subr.mxu0 0.0
    %919 = vmatpush1.msra.mxu0 %v66
    %920 = vmatprep.subr.mxu0 0.0
    %921 = vmatpush1.msra.mxu0 %v65
    %922 = vmatprep.subr.mxu0 0.0
    %923 = vmatpush1.msra.mxu0 %v64
    %924 = vmatprep.subr.mxu0 0.0
    %925 = vmatpush1.msra.mxu0 %v63
    %926 = vmatprep.subr.mxu0 0.0
    %927 = vmatpush1.msra.mxu0 %v62
    %928 = vmatprep.subr.mxu0 0.0
    %929 = vmatpush1.msra.mxu0 %v61
    %930 = vmatprep.subr.mxu0 0.0
    %931 = vmatpush1.msra.mxu0 %v60
    %932 = vmatprep.subr.mxu0 0.0
    %933 = vmatpush1.msra.mxu0 %v59
    %934 = vmatprep.subr.mxu0 0.0
    %935 = vmatpush1.msra.mxu0 %v58
    %936 = vmatprep.subr.mxu0 0.0
    %937 = vmatpush2.msra.mxu0 0.0
    %938 = vmatprep.subr.mxu0 0.0
    %939 = vmatpush2.msra.mxu0 0.0
    %940 = vmatprep.subr.mxu0 0.0
    %941 = vmatpush2.msra.mxu0 0.0
    %942 = vmatprep.subr.mxu0 0.0
    %943 = vmatpush2.msra.mxu0 0.0
    %944 = vmatprep.subr.mxu0 0.0
    %945 = vmatpush2.msra.mxu0 0.0
    %946 = vmatprep.subr.mxu0 0.0
    %947 = vmatpush2.msra.mxu0 0.0
    %948 = vmatprep.subr.mxu0 0.0
    %949 = vmatpush2.msra.mxu0 0.0
    %950 = vmatprep.subr.mxu0 0.0
    %951 = vmatpush2.msra.mxu0 0.0
    %952 = vmatprep.subr.mxu0 0.0
    %953 = vmatpush2.msra.mxu0 0.0
    %954 = vmatprep.subr.mxu0 0.0
    %955 = vmatpush2.msra.mxu0 0.0
    %956 = vmatprep.subr.mxu0 0.0
    %957 = vmatpush2.msra.mxu0 0.0
    %958 = vmatprep.subr.mxu0 0.0
    %959 = vmatpush2.msra.mxu0 0.0
    %960 = vmatprep.subr.mxu0 0.0
    %961 = vmatpush2.msra.mxu0 0.0
    %962 = vmatprep.subr.mxu0 0.0
    %963 = vmatpush2.msra.mxu0 0.0
    %964 = vmatprep.subr.mxu0 0.0
    %965 = vmatpush2.msra.mxu0 0.0
    %966 = vmatprep.subr.mxu0 0.0
    %967 = vmatpush2.msra.mxu0 0.0
    %968 = vmatprep.mubr.f32.mxu0 0.0
    %969 = vmatmul.mubr.f32.gmra.mxu0 %v755
    %v970 = vpop.f32.mrf.mxu0
    %v971 = vadd.f32 0.0, %v970
    %v972 = vpop.f32.mrf.mxu0
    %973 = vdwg.mxu0
    %v974 = vadd.f32 %v681, %v971
    %v975 = vmax.f32 %v974, 0.0
    %976 = vmatprep.subr.mxu0 0.0
    %977 = vmatpush1.msra.mxu0 %v57
    %978 = vmatprep.subr.mxu0 0.0
    %979 = vmatpush1.msra.mxu0 %v56
    %980 = vmatprep.subr.mxu0 0.0
    %981 = vmatpush1.msra.mxu0 %v55
    %982 = vmatprep.subr.mxu0 0.0
    %983 = vmatpush1.msra.mxu0 %v54
    %984 = vmatprep.subr.mxu0 0.0
    %985 = vmatpush1.msra.mxu0 %v53
    %986 = vmatprep.subr.mxu0 0.0
    %987 = vmatpush1.msra.mxu0 %v52
    %988 = vmatprep.subr.mxu0 0.0
    %989 = vmatpush1.msra.mxu0 %v51
    %990 = vmatprep.subr.mxu0 0.0
    %991 = vmatpush1.msra.mxu0 %v50
    %992 = vmatprep.subr.mxu0 0.0
    %993 = vmatpush1.msra.mxu0 %v49
    %994 = vmatprep.subr.mxu0 0.0
    %995 = vmatpush1.msra.mxu0 %v48
    %996 = vmatprep.subr.mxu0 0.0
    %997 = vmatpush1.msra.mxu0 %v47
    %998 = vmatprep.subr.mxu0 0.0
    %999 = vmatpush1.msra.mxu0 %v46
    %1000 = vmatprep.subr.mxu0 0.0
    %1001 = vmatpush1.msra.mxu0 %v45
    %1002 = vmatprep.subr.mxu0 0.0
    %1003 = vmatpush1.msra.mxu0 %v44
    %1004 = vmatprep.subr.mxu0 0.0
    %1005 = vmatpush1.msra.mxu0 %v43
    %1006 = vmatprep.subr.mxu0 0.0
    %1007 = vmatpush1.msra.mxu0 %v42
    %1008 = vmatprep.subr.mxu0 0.0
    %1009 = vmatpush2.msra.mxu0 0.0
    %1010 = vmatprep.subr.mxu0 0.0
    %1011 = vmatpush2.msra.mxu0 0.0
    %1012 = vmatprep.subr.mxu0 0.0
    %1013 = vmatpush2.msra.mxu0 0.0
    %1014 = vmatprep.subr.mxu0 0.0
    %1015 = vmatpush2.msra.mxu0 0.0
    %1016 = vmatprep.subr.mxu0 0.0
    %1017 = vmatpush2.msra.mxu0 0.0
    %1018 = vmatprep.subr.mxu0 0.0
    %1019 = vmatpush2.msra.mxu0 0.0
    %1020 = vmatprep.subr.mxu0 0.0
    %1021 = vmatpush2.msra.mxu0 0.0
    %1022 = vmatprep.subr.mxu0 0.0
    %1023 = vmatpush2.msra.mxu0 0.0
    %1024 = vmatprep.subr.mxu0 0.0
    %1025 = vmatpush2.msra.mxu0 0.0
    %1026 = vmatprep.subr.mxu0 0.0
    %1027 = vmatpush2.msra.mxu0 0.0
    %1028 = vmatprep.subr.mxu0 0.0
    %1029 = vmatpush2.msra.mxu0 0.0
    %1030 = vmatprep.subr.mxu0 0.0
    %1031 = vmatpush2.msra.mxu0 0.0
    %1032 = vmatprep.subr.mxu0 0.0
    %1033 = vmatpush2.msra.mxu0 0.0
    %1034 = vmatprep.subr.mxu0 0.0
    %1035 = vmatpush2.msra.mxu0 0.0
    %1036 = vmatprep.subr.mxu0 0.0
    %1037 = vmatpush2.msra.mxu0 0.0
    %1038 = vmatprep.subr.mxu0 0.0
    %1039 = vmatpush2.msra.mxu0 0.0
    %1040 = vmatprep.mubr.f32.mxu0 0.0
    %1041 = vmatmul.mubr.f32.gmra.mxu0 %v832
    %v1042 = vpop.f32.mrf.mxu0
    %v1043 = vadd.f32 0.0, %v1042
    %v1044 = vpop.f32.mrf.mxu0
    %1045 = vdwg.mxu0
    %v1047 = vrot.slane %v1043, 4
    %v1049 = vadd.f32 %v168, %v1047
    %v1050 = vmax.f32 %v1049, 0.0
    %v1052 = vrot.slane %v1050, 4
    %1054 = vmatprep.subr.mxu0 0.0
    %1055 = vmatpush1.msra.mxu0 %v89
    %1056 = vmatprep.subr.mxu0 0.0
    %1057 = vmatpush1.msra.mxu0 %v88
    %1058 = vmatprep.subr.mxu0 0.0
    %1059 = vmatpush1.msra.mxu0 %v87
    %1060 = vmatprep.subr.mxu0 0.0
    %1061 = vmatpush1.msra.mxu0 %v86
    %1062 = vmatprep.subr.mxu0 0.0
    %1063 = vmatpush1.msra.mxu0 %v85
    %1064 = vmatprep.subr.mxu0 0.0
    %1065 = vmatpush1.msra.mxu0 %v84
    %1066 = vmatprep.subr.mxu0 0.0
    %1067 = vmatpush1.msra.mxu0 %v83
    %1068 = vmatprep.subr.mxu0 0.0
    %1069 = vmatpush1.msra.mxu0 %v82
    %1070 = vmatprep.subr.mxu0 0.0
    %1071 = vmatpush1.msra.mxu0 %v81
    %1072 = vmatprep.subr.mxu0 0.0
    %1073 = vmatpush1.msra.mxu0 %v80
    %1074 = vmatprep.subr.mxu0 0.0
    %1075 = vmatpush1.msra.mxu0 %v79
    %1076 = vmatprep.subr.mxu0 0.0
    %1077 = vmatpush1.msra.mxu0 %v78
    %1078 = vmatprep.subr.mxu0 0.0
    %1079 = vmatpush1.msra.mxu0 %v77
    %1080 = vmatprep.subr.mxu0 0.0
    %1081 = vmatpush1.msra.mxu0 %v76
    %1082 = vmatprep.subr.mxu0 0.0
    %1083 = vmatpush1.msra.mxu0 %v75
    %1084 = vmatprep.subr.mxu0 0.0
    %1085 = vmatpush1.msra.mxu0 %v74
    %1086 = vmatprep.subr.mxu0 0.0
    %1087 = vmatpush2.msra.mxu0 0.0
    %1088 = vmatprep.subr.mxu0 0.0
    %1089 = vmatpush2.msra.mxu0 0.0
    %1090 = vmatprep.subr.mxu0 0.0
    %1091 = vmatpush2.msra.mxu0 0.0
    %1092 = vmatprep.subr.mxu0 0.0
    %1093 = vmatpush2.msra.mxu0 0.0
    %1094 = vmatprep.subr.mxu0 0.0
    %1095 = vmatpush2.msra.mxu0 0.0
    %1096 = vmatprep.subr.mxu0 0.0
    %1097 = vmatpush2.msra.mxu0 0.0
    %1098 = vmatprep.subr.mxu0 0.0
    %1099 = vmatpush2.msra.mxu0 0.0
    %1100 = vmatprep.subr.mxu0 0.0
    %1101 = vmatpush2.msra.mxu0 0.0
    %1102 = vmatprep.subr.mxu0 0.0
    %1103 = vmatpush2.msra.mxu0 0.0
    %1104 = vmatprep.subr.mxu0 0.0
    %1105 = vmatpush2.msra.mxu0 0.0
    %1106 = vmatprep.subr.mxu0 0.0
    %1107 = vmatpush2.msra.mxu0 0.0
    %1108 = vmatprep.subr.mxu0 0.0
    %1109 = vmatpush2.msra.mxu0 0.0
    %1110 = vmatprep.subr.mxu0 0.0
    %1111 = vmatpush2.msra.mxu0 0.0
    %1112 = vmatprep.subr.mxu0 0.0
    %1113 = vmatpush2.msra.mxu0 0.0
    %1114 = vmatprep.subr.mxu0 0.0
    %1115 = vmatpush2.msra.mxu0 0.0
    %1116 = vmatprep.subr.mxu0 0.0
    %1117 = vmatpush2.msra.mxu0 0.0
    %1118 = vmatprep.mubr.f32.mxu0 0.0
    %1119 = vmatmul.mubr.f32.gmra.mxu0 %v1052
    %v1120 = vpop.f32.mrf.mxu0
    %v1121 = vadd.f32 %v244, %v1120
    %v1122 = vpop.f32.mrf.mxu0
    %1123 = vdwg.mxu0
    %1124 = vmatprep.subr.mxu0 0.0
    %1125 = vmatpush1.msra.mxu0 %v73
    %1126 = vmatprep.subr.mxu0 0.0
    %1127 = vmatpush1.msra.mxu0 %v72
    %1128 = vmatprep.subr.mxu0 0.0
    %1129 = vmatpush1.msra.mxu0 %v71
    %1130 = vmatprep.subr.mxu0 0.0
    %1131 = vmatpush1.msra.mxu0 %v70
    %1132 = vmatprep.subr.mxu0 0.0
    %1133 = vmatpush1.msra.mxu0 %v69
    %1134 = vmatprep.subr.mxu0 0.0
    %1135 = vmatpush1.msra.mxu0 %v68
    %1136 = vmatprep.subr.mxu0 0.0
    %1137 = vmatpush1.msra.mxu0 %v67
    %1138 = vmatprep.subr.mxu0 0.0
    %1139 = vmatpush1.msra.mxu0 %v66
    %1140 = vmatprep.subr.mxu0 0.0
    %1141 = vmatpush1.msra.mxu0 %v65
    %1142 = vmatprep.subr.mxu0 0.0
    %1143 = vmatpush1.msra.mxu0 %v64
    %1144 = vmatprep.subr.mxu0 0.0
    %1145 = vmatpush1.msra.mxu0 %v63
    %1146 = vmatprep.subr.mxu0 0.0
    %1147 = vmatpush1.msra.mxu0 %v62
    %1148 = vmatprep.subr.mxu0 0.0
    %1149 = vmatpush1.msra.mxu0 %v61
    %1150 = vmatprep.subr.mxu0 0.0
    %1151 = vmatpush1.msra.mxu0 %v60
    %1152 = vmatprep.subr.mxu0 0.0
    %1153 = vmatpush1.msra.mxu0 %v59
    %1154 = vmatprep.subr.mxu0 0.0
    %1155 = vmatpush1.msra.mxu0 %v58
    %1156 = vmatprep.subr.mxu0 0.0
    %1157 = vmatpush2.msra.mxu0 0.0
    %1158 = vmatprep.subr.mxu0 0.0
    %1159 = vmatpush2.msra.mxu0 0.0
    %1160 = vmatprep.subr.mxu0 0.0
    %1161 = vmatpush2.msra.mxu0 0.0
    %1162 = vmatprep.subr.mxu0 0.0
    %1163 = vmatpush2.msra.mxu0 0.0
    %1164 = vmatprep.subr.mxu0 0.0
    %1165 = vmatpush2.msra.mxu0 0.0
    %1166 = vmatprep.subr.mxu0 0.0
    %1167 = vmatpush2.msra.mxu0 0.0
    %1168 = vmatprep.subr.mxu0 0.0
    %1169 = vmatpush2.msra.mxu0 0.0
    %1170 = vmatprep.subr.mxu0 0.0
    %1171 = vmatpush2.msra.mxu0 0.0
    %1172 = vmatprep.subr.mxu0 0.0
    %1173 = vmatpush2.msra.mxu0 0.0
    %1174 = vmatprep.subr.mxu0 0.0
    %1175 = vmatpush2.msra.mxu0 0.0
    %1176 = vmatprep.subr.mxu0 0.0
    %1177 = vmatpush2.msra.mxu0 0.0
    %1178 = vmatprep.subr.mxu0 0.0
    %1179 = vmatpush2.msra.mxu0 0.0
    %1180 = vmatprep.subr.mxu0 0.0
    %1181 = vmatpush2.msra.mxu0 0.0
    %1182 = vmatprep.subr.mxu0 0.0
    %1183 = vmatpush2.msra.mxu0 0.0
    %1184 = vmatprep.subr.mxu0 0.0
    %1185 = vmatpush2.msra.mxu0 0.0
    %1186 = vmatprep.subr.mxu0 0.0
    %1187 = vmatpush2.msra.mxu0 0.0
    %1188 = vmatprep.mubr.f32.mxu0 0.0
    %1189 = vmatmul.mubr.f32.gmra.mxu0 %v975
    %v1190 = vpop.f32.mrf.mxu0
    %v1191 = vadd.f32 0.0, %v1190
    %v1192 = vpop.f32.mrf.mxu0
    %1193 = vdwg.mxu0
    %v1194 = vadd.f32 %v901, %v1191
    %v1195 = vmax.f32 %v1194, 0.0
    %1196 = vmatprep.subr.mxu0 0.0
    %1197 = vmatpush1.msra.mxu0 %v57
    %1198 = vmatprep.subr.mxu0 0.0
    %1199 = vmatpush1.msra.mxu0 %v56
    %1200 = vmatprep.subr.mxu0 0.0
    %1201 = vmatpush1.msra.mxu0 %v55
    %1202 = vmatprep.subr.mxu0 0.0
    %1203 = vmatpush1.msra.mxu0 %v54
    %1204 = vmatprep.subr.mxu0 0.0
    %1205 = vmatpush1.msra.mxu0 %v53
    %1206 = vmatprep.subr.mxu0 0.0
    %1207 = vmatpush1.msra.mxu0 %v52
    %1208 = vmatprep.subr.mxu0 0.0
    %1209 = vmatpush1.msra.mxu0 %v51
    %1210 = vmatprep.subr.mxu0 0.0
    %1211 = vmatpush1.msra.mxu0 %v50
    %1212 = vmatprep.subr.mxu0 0.0
    %1213 = vmatpush1.msra.mxu0 %v49
    %1214 = vmatprep.subr.mxu0 0.0
    %1215 = vmatpush1.msra.mxu0 %v48
    %1216 = vmatprep.subr.mxu0 0.0
    %1217 = vmatpush1.msra.mxu0 %v47
    %1218 = vmatprep.subr.mxu0 0.0
    %1219 = vmatpush1.msra.mxu0 %v46
    %1220 = vmatprep.subr.mxu0 0.0
    %1221 = vmatpush1.msra.mxu0 %v45
    %1222 = vmatprep.subr.mxu0 0.0
    %1223 = vmatpush1.msra.mxu0 %v44
    %1224 = vmatprep.subr.mxu0 0.0
    %1225 = vmatpush1.msra.mxu0 %v43
    %1226 = vmatprep.subr.mxu0 0.0
    %1227 = vmatpush1.msra.mxu0 %v42
    %1228 = vmatprep.subr.mxu0 0.0
    %1229 = vmatpush2.msra.mxu0 0.0
    %1230 = vmatprep.subr.mxu0 0.0
    %1231 = vmatpush2.msra.mxu0 0.0
    %1232 = vmatprep.subr.mxu0 0.0
    %1233 = vmatpush2.msra.mxu0 0.0
    %1234 = vmatprep.subr.mxu0 0.0
    %1235 = vmatpush2.msra.mxu0 0.0
    %1236 = vmatprep.subr.mxu0 0.0
    %1237 = vmatpush2.msra.mxu0 0.0
    %1238 = vmatprep.subr.mxu0 0.0
    %1239 = vmatpush2.msra.mxu0 0.0
    %1240 = vmatprep.subr.mxu0 0.0
    %1241 = vmatpush2.msra.mxu0 0.0
    %1242 = vmatprep.subr.mxu0 0.0
    %1243 = vmatpush2.msra.mxu0 0.0
    %1244 = vmatprep.subr.mxu0 0.0
    %1245 = vmatpush2.msra.mxu0 0.0
    %1246 = vmatprep.subr.mxu0 0.0
    %1247 = vmatpush2.msra.mxu0 0.0
    %1248 = vmatprep.subr.mxu0 0.0
    %1249 = vmatpush2.msra.mxu0 0.0
    %1250 = vmatprep.subr.mxu0 0.0
    %1251 = vmatpush2.msra.mxu0 0.0
    %1252 = vmatprep.subr.mxu0 0.0
    %1253 = vmatpush2.msra.mxu0 0.0
    %1254 = vmatprep.subr.mxu0 0.0
    %1255 = vmatpush2.msra.mxu0 0.0
    %1256 = vmatprep.subr.mxu0 0.0
    %1257 = vmatpush2.msra.mxu0 0.0
    %1258 = vmatprep.subr.mxu0 0.0
    %1259 = vmatpush2.msra.mxu0 0.0
    %1260 = vmatprep.mubr.f32.mxu0 0.0
    %1261 = vmatmul.mubr.f32.gmra.mxu0 %v1052
    %v1262 = vpop.f32.mrf.mxu0
    %v1263 = vadd.f32 0.0, %v1262
    %v1264 = vpop.f32.mrf.mxu0
    %1265 = vdwg.mxu0
    %v1267 = vrot.slane %v1263, 3
    %v1269 = vadd.f32 %v168, %v1267
    %v1270 = vmax.f32 %v1269, 0.0
    %v1272 = vrot.slane %v1270, 5
    %1274 = vmatprep.subr.mxu0 0.0
    %1275 = vmatpush1.msra.mxu0 %v89
    %1276 = vmatprep.subr.mxu0 0.0
    %1277 = vmatpush1.msra.mxu0 %v88
    %1278 = vmatprep.subr.mxu0 0.0
    %1279 = vmatpush1.msra.mxu0 %v87
    %1280 = vmatprep.subr.mxu0 0.0
    %1281 = vmatpush1.msra.mxu0 %v86
    %1282 = vmatprep.subr.mxu0 0.0
    %1283 = vmatpush1.msra.mxu0 %v85
    %1284 = vmatprep.subr.mxu0 0.0
    %1285 = vmatpush1.msra.mxu0 %v84
    %1286 = vmatprep.subr.mxu0 0.0
    %1287 = vmatpush1.msra.mxu0 %v83
    %1288 = vmatprep.subr.mxu0 0.0
    %1289 = vmatpush1.msra.mxu0 %v82
    %1290 = vmatprep.subr.mxu0 0.0
    %1291 = vmatpush1.msra.mxu0 %v81
    %1292 = vmatprep.subr.mxu0 0.0
    %1293 = vmatpush1.msra.mxu0 %v80
    %1294 = vmatprep.subr.mxu0 0.0
    %1295 = vmatpush1.msra.mxu0 %v79
    %1296 = vmatprep.subr.mxu0 0.0
    %1297 = vmatpush1.msra.mxu0 %v78
    %1298 = vmatprep.subr.mxu0 0.0
    %1299 = vmatpush1.msra.mxu0 %v77
    %1300 = vmatprep.subr.mxu0 0.0
    %1301 = vmatpush1.msra.mxu0 %v76
    %1302 = vmatprep.subr.mxu0 0.0
    %1303 = vmatpush1.msra.mxu0 %v75
    %1304 = vmatprep.subr.mxu0 0.0
    %1305 = vmatpush1.msra.mxu0 %v74
    %1306 = vmatprep.subr.mxu0 0.0
    %1307 = vmatpush2.msra.mxu0 0.0
    %1308 = vmatprep.subr.mxu0 0.0
    %1309 = vmatpush2.msra.mxu0 0.0
    %1310 = vmatprep.subr.mxu0 0.0
    %1311 = vmatpush2.msra.mxu0 0.0
    %1312 = vmatprep.subr.mxu0 0.0
    %1313 = vmatpush2.msra.mxu0 0.0
    %1314 = vmatprep.subr.mxu0 0.0
    %1315 = vmatpush2.msra.mxu0 0.0
    %1316 = vmatprep.subr.mxu0 0.0
    %1317 = vmatpush2.msra.mxu0 0.0
    %1318 = vmatprep.subr.mxu0 0.0
    %1319 = vmatpush2.msra.mxu0 0.0
    %1320 = vmatprep.subr.mxu0 0.0
    %1321 = vmatpush2.msra.mxu0 0.0
    %1322 = vmatprep.subr.mxu0 0.0
    %1323 = vmatpush2.msra.mxu0 0.0
    %1324 = vmatprep.subr.mxu0 0.0
    %1325 = vmatpush2.msra.mxu0 0.0
    %1326 = vmatprep.subr.mxu0 0.0
    %1327 = vmatpush2.msra.mxu0 0.0
    %1328 = vmatprep.subr.mxu0 0.0
    %1329 = vmatpush2.msra.mxu0 0.0
    %1330 = vmatprep.subr.mxu0 0.0
    %1331 = vmatpush2.msra.mxu0 0.0
    %1332 = vmatprep.subr.mxu0 0.0
    %1333 = vmatpush2.msra.mxu0 0.0
    %1334 = vmatprep.subr.mxu0 0.0
    %1335 = vmatpush2.msra.mxu0 0.0
    %1336 = vmatprep.subr.mxu0 0.0
    %1337 = vmatpush2.msra.mxu0 0.0
    %1338 = vmatprep.mubr.f32.mxu0 0.0
    %1339 = vmatmul.mubr.f32.gmra.mxu0 %v1272
    %v1340 = vpop.f32.mrf.mxu0
    %v1341 = vadd.f32 %v244, %v1340
    %v1342 = vpop.f32.mrf.mxu0
    %1343 = vdwg.mxu0
    %1344 = vmatprep.subr.mxu0 0.0
    %1345 = vmatpush1.msra.mxu0 %v73
    %1346 = vmatprep.subr.mxu0 0.0
    %1347 = vmatpush1.msra.mxu0 %v72
    %1348 = vmatprep.subr.mxu0 0.0
    %1349 = vmatpush1.msra.mxu0 %v71
    %1350 = vmatprep.subr.mxu0 0.0
    %1351 = vmatpush1.msra.mxu0 %v70
    %1352 = vmatprep.subr.mxu0 0.0
    %1353 = vmatpush1.msra.mxu0 %v69
    %1354 = vmatprep.subr.mxu0 0.0
    %1355 = vmatpush1.msra.mxu0 %v68
    %1356 = vmatprep.subr.mxu0 0.0
    %1357 = vmatpush1.msra.mxu0 %v67
    %1358 = vmatprep.subr.mxu0 0.0
    %1359 = vmatpush1.msra.mxu0 %v66
    %1360 = vmatprep.subr.mxu0 0.0
    %1361 = vmatpush1.msra.mxu0 %v65
    %1362 = vmatprep.subr.mxu0 0.0
    %1363 = vmatpush1.msra.mxu0 %v64
    %1364 = vmatprep.subr.mxu0 0.0
    %1365 = vmatpush1.msra.mxu0 %v63
    %1366 = vmatprep.subr.mxu0 0.0
    %1367 = vmatpush1.msra.mxu0 %v62
    %1368 = vmatprep.subr.mxu0 0.0
    %1369 = vmatpush1.msra.mxu0 %v61
    %1370 = vmatprep.subr.mxu0 0.0
    %1371 = vmatpush1.msra.mxu0 %v60
    %1372 = vmatprep.subr.mxu0 0.0
    %1373 = vmatpush1.msra.mxu0 %v59
    %1374 = vmatprep.subr.mxu0 0.0
    %1375 = vmatpush1.msra.mxu0 %v58
    %1376 = vmatprep.subr.mxu0 0.0
    %1377 = vmatpush2.msra.mxu0 0.0
    %1378 = vmatprep.subr.mxu0 0.0
    %1379 = vmatpush2.msra.mxu0 0.0
    %1380 = vmatprep.subr.mxu0 0.0
    %1381 = vmatpush2.msra.mxu0 0.0
    %1382 = vmatprep.subr.mxu0 0.0
    %1383 = vmatpush2.msra.mxu0 0.0
    %1384 = vmatprep.subr.mxu0 0.0
    %1385 = vmatpush2.msra.mxu0 0.0
    %1386 = vmatprep.subr.mxu0 0.0
    %1387 = vmatpush2.msra.mxu0 0.0
    %1388 = vmatprep.subr.mxu0 0.0
    %1389 = vmatpush2.msra.mxu0 0.0
    %1390 = vmatprep.subr.mxu0 0.0
    %1391 = vmatpush2.msra.mxu0 0.0
    %1392 = vmatprep.subr.mxu0 0.0
    %1393 = vmatpush2.msra.mxu0 0.0
    %1394 = vmatprep.subr.mxu0 0.0
    %1395 = vmatpush2.msra.mxu0 0.0
    %1396 = vmatprep.subr.mxu0 0.0
    %1397 = vmatpush2.msra.mxu0 0.0
    %1398 = vmatprep.subr.mxu0 0.0
    %1399 = vmatpush2.msra.mxu0 0.0
    %1400 = vmatprep.subr.mxu0 0.0
    %1401 = vmatpush2.msra.mxu0 0.0
    %1402 = vmatprep.subr.mxu0 0.0
    %1403 = vmatpush2.msra.mxu0 0.0
    %1404 = vmatprep.subr.mxu0 0.0
    %1405 = vmatpush2.msra.mxu0 0.0
    %1406 = vmatprep.subr.mxu0 0.0
    %1407 = vmatpush2.msra.mxu0 0.0
    %1408 = vmatprep.mubr.f32.mxu0 0.0
    %1409 = vmatmul.mubr.f32.gmra.mxu0 %v1195
    %v1410 = vpop.f32.mrf.mxu0
    %v1411 = vadd.f32 0.0, %v1410
    %v1412 = vpop.f32.mrf.mxu0
    %1413 = vdwg.mxu0
    %v1414 = vadd.f32 %v1121, %v1411
    %v1415 = vmax.f32 %v1414, 0.0
    %1416 = vmatprep.subr.mxu0 0.0
    %1417 = vmatpush1.msra.mxu0 %v57
    %1418 = vmatprep.subr.mxu0 0.0
    %1419 = vmatpush1.msra.mxu0 %v56
    %1420 = vmatprep.subr.mxu0 0.0
    %1421 = vmatpush1.msra.mxu0 %v55
    %1422 = vmatprep.subr.mxu0 0.0
    %1423 = vmatpush1.msra.mxu0 %v54
    %1424 = vmatprep.subr.mxu0 0.0
    %1425 = vmatpush1.msra.mxu0 %v53
    %1426 = vmatprep.subr.mxu0 0.0
    %1427 = vmatpush1.msra.mxu0 %v52
    %1428 = vmatprep.subr.mxu0 0.0
    %1429 = vmatpush1.msra.mxu0 %v51
    %1430 = vmatprep.subr.mxu0 0.0
    %1431 = vmatpush1.msra.mxu0 %v50
    %1432 = vmatprep.subr.mxu0 0.0
    %1433 = vmatpush1.msra.mxu0 %v49
    %1434 = vmatprep.subr.mxu0 0.0
    %1435 = vmatpush1.msra.mxu0 %v48
    %1436 = vmatprep.subr.mxu0 0.0
    %1437 = vmatpush1.msra.mxu0 %v47
    %1438 = vmatprep.subr.mxu0 0.0
    %1439 = vmatpush1.msra.mxu0 %v46
    %1440 = vmatprep.subr.mxu0 0.0
    %1441 = vmatpush1.msra.mxu0 %v45
    %1442 = vmatprep.subr.mxu0 0.0
    %1443 = vmatpush1.msra.mxu0 %v44
    %1444 = vmatprep.subr.mxu0 0.0
    %1445 = vmatpush1.msra.mxu0 %v43
    %1446 = vmatprep.subr.mxu0 0.0
    %1447 = vmatpush1.msra.mxu0 %v42
    %1448 = vmatprep.subr.mxu0 0.0
    %1449 = vmatpush2.msra.mxu0 0.0
    %1450 = vmatprep.subr.mxu0 0.0
    %1451 = vmatpush2.msra.mxu0 0.0
    %1452 = vmatprep.subr.mxu0 0.0
    %1453 = vmatpush2.msra.mxu0 0.0
    %1454 = vmatprep.subr.mxu0 0.0
    %1455 = vmatpush2.msra.mxu0 0.0
    %1456 = vmatprep.subr.mxu0 0.0
    %1457 = vmatpush2.msra.mxu0 0.0
    %1458 = vmatprep.subr.mxu0 0.0
    %1459 = vmatpush2.msra.mxu0 0.0
    %1460 = vmatprep.subr.mxu0 0.0
    %1461 = vmatpush2.msra.mxu0 0.0
    %1462 = vmatprep.subr.mxu0 0.0
    %1463 = vmatpush2.msra.mxu0 0.0
    %1464 = vmatprep.subr.mxu0 0.0
    %1465 = vmatpush2.msra.mxu0 0.0
    %1466 = vmatprep.subr.mxu0 0.0
    %1467 = vmatpush2.msra.mxu0 0.0
    %1468 = vmatprep.subr.mxu0 0.0
    %1469 = vmatpush2.msra.mxu0 0.0
    %1470 = vmatprep.subr.mxu0 0.0
    %1471 = vmatpush2.msra.mxu0 0.0
    %1472 = vmatprep.subr.mxu0 0.0
    %1473 = vmatpush2.msra.mxu0 0.0
    %1474 = vmatprep.subr.mxu0 0.0
    %1475 = vmatpush2.msra.mxu0 0.0
    %1476 = vmatprep.subr.mxu0 0.0
    %1477 = vmatpush2.msra.mxu0 0.0
    %1478 = vmatprep.subr.mxu0 0.0
    %1479 = vmatpush2.msra.mxu0 0.0
    %1480 = vmatprep.mubr.f32.mxu0 0.0
    %1481 = vmatmul.mubr.f32.gmra.mxu0 %v1272
    %v1482 = vpop.f32.mrf.mxu0
    %v1483 = vadd.f32 0.0, %v1482
    %v1484 = vpop.f32.mrf.mxu0
    %1485 = vdwg.mxu0
    %v1487 = vrot.slane %v1483, 2
    %v1489 = vadd.f32 %v168, %v1487
    %v1490 = vmax.f32 %v1489, 0.0
    %v1492 = vrot.slane %v1490, 6
    %1494 = vmatprep.subr.mxu0 0.0
    %1495 = vmatpush1.msra.mxu0 %v89
    %1496 = vmatprep.subr.mxu0 0.0
    %1497 = vmatpush1.msra.mxu0 %v88
    %1498 = vmatprep.subr.mxu0 0.0
    %1499 = vmatpush1.msra.mxu0 %v87
    %1500 = vmatprep.subr.mxu0 0.0
    %1501 = vmatpush1.msra.mxu0 %v86
    %1502 = vmatprep.subr.mxu0 0.0
    %1503 = vmatpush1.msra.mxu0 %v85
    %1504 = vmatprep.subr.mxu0 0.0
    %1505 = vmatpush1.msra.mxu0 %v84
    %1506 = vmatprep.subr.mxu0 0.0
    %1507 = vmatpush1.msra.mxu0 %v83
    %1508 = vmatprep.subr.mxu0 0.0
    %1509 = vmatpush1.msra.mxu0 %v82
    %1510 = vmatprep.subr.mxu0 0.0
    %1511 = vmatpush1.msra.mxu0 %v81
    %1512 = vmatprep.subr.mxu0 0.0
    %1513 = vmatpush1.msra.mxu0 %v80
    %1514 = vmatprep.subr.mxu0 0.0
    %1515 = vmatpush1.msra.mxu0 %v79
    %1516 = vmatprep.subr.mxu0 0.0
    %1517 = vmatpush1.msra.mxu0 %v78
    %1518 = vmatprep.subr.mxu0 0.0
    %1519 = vmatpush1.msra.mxu0 %v77
    %1520 = vmatprep.subr.mxu0 0.0
    %1521 = vmatpush1.msra.mxu0 %v76
    %1522 = vmatprep.subr.mxu0 0.0
    %1523 = vmatpush1.msra.mxu0 %v75
    %1524 = vmatprep.subr.mxu0 0.0
    %1525 = vmatpush1.msra.mxu0 %v74
    %1526 = vmatprep.subr.mxu0 0.0
    %1527 = vmatpush2.msra.mxu0 0.0
    %1528 = vmatprep.subr.mxu0 0.0
    %1529 = vmatpush2.msra.mxu0 0.0
    %1530 = vmatprep.subr.mxu0 0.0
    %1531 = vmatpush2.msra.mxu0 0.0
    %1532 = vmatprep.subr.mxu0 0.0
    %1533 = vmatpush2.msra.mxu0 0.0
    %1534 = vmatprep.subr.mxu0 0.0
    %1535 = vmatpush2.msra.mxu0 0.0
    %1536 = vmatprep.subr.mxu0 0.0
    %1537 = vmatpush2.msra.mxu0 0.0
    %1538 = vmatprep.subr.mxu0 0.0
    %1539 = vmatpush2.msra.mxu0 0.0
    %1540 = vmatprep.subr.mxu0 0.0
    %1541 = vmatpush2.msra.mxu0 0.0
    %1542 = vmatprep.subr.mxu0 0.0
    %1543 = vmatpush2.msra.mxu0 0.0
    %1544 = vmatprep.subr.mxu0 0.0
    %1545 = vmatpush2.msra.mxu0 0.0
    %1546 = vmatprep.subr.mxu0 0.0
    %1547 = vmatpush2.msra.mxu0 0.0
    %1548 = vmatprep.subr.mxu0 0.0
    %1549 = vmatpush2.msra.mxu0 0.0
    %1550 = vmatprep.subr.mxu0 0.0
    %1551 = vmatpush2.msra.mxu0 0.0
    %1552 = vmatprep.subr.mxu0 0.0
    %1553 = vmatpush2.msra.mxu0 0.0
    %1554 = vmatprep.subr.mxu0 0.0
    %1555 = vmatpush2.msra.mxu0 0.0
    %1556 = vmatprep.subr.mxu0 0.0
    %1557 = vmatpush2.msra.mxu0 0.0
    %1558 = vmatprep.mubr.f32.mxu0 0.0
    %1559 = vmatmul.mubr.f32.gmra.mxu0 %v1492
    %v1560 = vpop.f32.mrf.mxu0
    %v1561 = vadd.f32 %v244, %v1560
    %v1562 = vpop.f32.mrf.mxu0
    %1563 = vdwg.mxu0
    %1564 = vmatprep.subr.mxu0 0.0
    %1565 = vmatpush1.msra.mxu0 %v73
    %1566 = vmatprep.subr.mxu0 0.0
    %1567 = vmatpush1.msra.mxu0 %v72
    %1568 = vmatprep.subr.mxu0 0.0
    %1569 = vmatpush1.msra.mxu0 %v71
    %1570 = vmatprep.subr.mxu0 0.0
    %1571 = vmatpush1.msra.mxu0 %v70
    %1572 = vmatprep.subr.mxu0 0.0
    %1573 = vmatpush1.msra.mxu0 %v69
    %1574 = vmatprep.subr.mxu0 0.0
    %1575 = vmatpush1.msra.mxu0 %v68
    %1576 = vmatprep.subr.mxu0 0.0
    %1577 = vmatpush1.msra.mxu0 %v67
    %1578 = vmatprep.subr.mxu0 0.0
    %1579 = vmatpush1.msra.mxu0 %v66
    %1580 = vmatprep.subr.mxu0 0.0
    %1581 = vmatpush1.msra.mxu0 %v65
    %1582 = vmatprep.subr.mxu0 0.0
    %1583 = vmatpush1.msra.mxu0 %v64
    %1584 = vmatprep.subr.mxu0 0.0
    %1585 = vmatpush1.msra.mxu0 %v63
    %1586 = vmatprep.subr.mxu0 0.0
    %1587 = vmatpush1.msra.mxu0 %v62
    %1588 = vmatprep.subr.mxu0 0.0
    %1589 = vmatpush1.msra.mxu0 %v61
    %1590 = vmatprep.subr.mxu0 0.0
    %1591 = vmatpush1.msra.mxu0 %v60
    %1592 = vmatprep.subr.mxu0 0.0
    %1593 = vmatpush1.msra.mxu0 %v59
    %1594 = vmatprep.subr.mxu0 0.0
    %1595 = vmatpush1.msra.mxu0 %v58
    %1596 = vmatprep.subr.mxu0 0.0
    %1597 = vmatpush2.msra.mxu0 0.0
    %1598 = vmatprep.subr.mxu0 0.0
    %1599 = vmatpush2.msra.mxu0 0.0
    %1600 = vmatprep.subr.mxu0 0.0
    %1601 = vmatpush2.msra.mxu0 0.0
    %1602 = vmatprep.subr.mxu0 0.0
    %1603 = vmatpush2.msra.mxu0 0.0
    %1604 = vmatprep.subr.mxu0 0.0
    %1605 = vmatpush2.msra.mxu0 0.0
    %1606 = vmatprep.subr.mxu0 0.0
    %1607 = vmatpush2.msra.mxu0 0.0
    %1608 = vmatprep.subr.mxu0 0.0
    %1609 = vmatpush2.msra.mxu0 0.0
    %1610 = vmatprep.subr.mxu0 0.0
    %1611 = vmatpush2.msra.mxu0 0.0
    %1612 = vmatprep.subr.mxu0 0.0
    %1613 = vmatpush2.msra.mxu0 0.0
    %1614 = vmatprep.subr.mxu0 0.0
    %1615 = vmatpush2.msra.mxu0 0.0
    %1616 = vmatprep.subr.mxu0 0.0
    %1617 = vmatpush2.msra.mxu0 0.0
    %1618 = vmatprep.subr.mxu0 0.0
    %1619 = vmatpush2.msra.mxu0 0.0
    %1620 = vmatprep.subr.mxu0 0.0
    %1621 = vmatpush2.msra.mxu0 0.0
    %1622 = vmatprep.subr.mxu0 0.0
    %1623 = vmatpush2.msra.mxu0 0.0
    %1624 = vmatprep.subr.mxu0 0.0
    %1625 = vmatpush2.msra.mxu0 0.0
    %1626 = vmatprep.subr.mxu0 0.0
    %1627 = vmatpush2.msra.mxu0 0.0
    %1628 = vmatprep.mubr.f32.mxu0 0.0
    %1629 = vmatmul.mubr.f32.gmra.mxu0 %v1415
    %v1630 = vpop.f32.mrf.mxu0
    %v1631 = vadd.f32 0.0, %v1630
    %v1632 = vpop.f32.mrf.mxu0
    %1633 = vdwg.mxu0
    %v1634 = vadd.f32 %v1341, %v1631
    %v1635 = vmax.f32 %v1634, 0.0
    %1636 = vmatprep.subr.mxu0 0.0
    %1637 = vmatpush1.msra.mxu0 %v57
    %1638 = vmatprep.subr.mxu0 0.0
    %1639 = vmatpush1.msra.mxu0 %v56
    %1640 = vmatprep.subr.mxu0 0.0
    %1641 = vmatpush1.msra.mxu0 %v55
    %1642 = vmatprep.subr.mxu0 0.0
    %1643 = vmatpush1.msra.mxu0 %v54
    %1644 = vmatprep.subr.mxu0 0.0
    %1645 = vmatpush1.msra.mxu0 %v53
    %1646 = vmatprep.subr.mxu0 0.0
    %1647 = vmatpush1.msra.mxu0 %v52
    %1648 = vmatprep.subr.mxu0 0.0
    %1649 = vmatpush1.msra.mxu0 %v51
    %1650 = vmatprep.subr.mxu0 0.0
    %1651 = vmatpush1.msra.mxu0 %v50
    %1652 = vmatprep.subr.mxu0 0.0
    %1653 = vmatpush1.msra.mxu0 %v49
    %1654 = vmatprep.subr.mxu0 0.0
    %1655 = vmatpush1.msra.mxu0 %v48
    %1656 = vmatprep.subr.mxu0 0.0
    %1657 = vmatpush1.msra.mxu0 %v47
    %1658 = vmatprep.subr.mxu0 0.0
    %1659 = vmatpush1.msra.mxu0 %v46
    %1660 = vmatprep.subr.mxu0 0.0
    %1661 = vmatpush1.msra.mxu0 %v45
    %1662 = vmatprep.subr.mxu0 0.0
    %1663 = vmatpush1.msra.mxu0 %v44
    %1664 = vmatprep.subr.mxu0 0.0
    %1665 = vmatpush1.msra.mxu0 %v43
    %1666 = vmatprep.subr.mxu0 0.0
    %1667 = vmatpush1.msra.mxu0 %v42
    %1668 = vmatprep.subr.mxu0 0.0
    %1669 = vmatpush2.msra.mxu0 0.0
    %1670 = vmatprep.subr.mxu0 0.0
    %1671 = vmatpush2.msra.mxu0 0.0
    %1672 = vmatprep.subr.mxu0 0.0
    %1673 = vmatpush2.msra.mxu0 0.0
    %1674 = vmatprep.subr.mxu0 0.0
    %1675 = vmatpush2.msra.mxu0 0.0
    %1676 = vmatprep.subr.mxu0 0.0
    %1677 = vmatpush2.msra.mxu0 0.0
    %1678 = vmatprep.subr.mxu0 0.0
    %1679 = vmatpush2.msra.mxu0 0.0
    %1680 = vmatprep.subr.mxu0 0.0
    %1681 = vmatpush2.msra.mxu0 0.0
    %1682 = vmatprep.subr.mxu0 0.0
    %1683 = vmatpush2.msra.mxu0 0.0
    %1684 = vmatprep.subr.mxu0 0.0
    %1685 = vmatpush2.msra.mxu0 0.0
    %1686 = vmatprep.subr.mxu0 0.0
    %1687 = vmatpush2.msra.mxu0 0.0
    %1688 = vmatprep.subr.mxu0 0.0
    %1689 = vmatpush2.msra.mxu0 0.0
    %1690 = vmatprep.subr.mxu0 0.0
    %1691 = vmatpush2.msra.mxu0 0.0
    %1692 = vmatprep.subr.mxu0 0.0
    %1693 = vmatpush2.msra.mxu0 0.0
    %1694 = vmatprep.subr.mxu0 0.0
    %1695 = vmatpush2.msra.mxu0 0.0
    %1696 = vmatprep.subr.mxu0 0.0
    %1697 = vmatpush2.msra.mxu0 0.0
    %1698 = vmatprep.subr.mxu0 0.0
    %1699 = vmatpush2.msra.mxu0 0.0
    %1700 = vmatprep.mubr.f32.mxu0 0.0
    %1701 = vmatmul.mubr.f32.gmra.mxu0 %v1492
    %v1702 = vpop.f32.mrf.mxu0
    %v1703 = vadd.f32 0.0, %v1702
    %v1704 = vpop.f32.mrf.mxu0
    %1705 = vdwg.mxu0
    %v1707 = vrot.slane %v1703, 1
    %v1709 = vadd.f32 %v168, %v1707
    %v1710 = vmax.f32 %v1709, 0.0
    %v1712 = vrot.slane %v1710, 7
    %1714 = vmatprep.subr.mxu0 0.0
    %1715 = vmatpush1.msra.mxu0 %v89
    %1716 = vmatprep.subr.mxu0 0.0
    %1717 = vmatpush1.msra.mxu0 %v88
    %1718 = vmatprep.subr.mxu0 0.0
    %1719 = vmatpush1.msra.mxu0 %v87
    %1720 = vmatprep.subr.mxu0 0.0
    %1721 = vmatpush1.msra.mxu0 %v86
    %1722 = vmatprep.subr.mxu0 0.0
    %1723 = vmatpush1.msra.mxu0 %v85
    %1724 = vmatprep.subr.mxu0 0.0
    %1725 = vmatpush1.msra.mxu0 %v84
    %1726 = vmatprep.subr.mxu0 0.0
    %1727 = vmatpush1.msra.mxu0 %v83
    %1728 = vmatprep.subr.mxu0 0.0
    %1729 = vmatpush1.msra.mxu0 %v82
    %1730 = vmatprep.subr.mxu0 0.0
    %1731 = vmatpush1.msra.mxu0 %v81
    %1732 = vmatprep.subr.mxu0 0.0
    %1733 = vmatpush1.msra.mxu0 %v80
    %1734 = vmatprep.subr.mxu0 0.0
    %1735 = vmatpush1.msra.mxu0 %v79
    %1736 = vmatprep.subr.mxu0 0.0
    %1737 = vmatpush1.msra.mxu0 %v78
    %1738 = vmatprep.subr.mxu0 0.0
    %1739 = vmatpush1.msra.mxu0 %v77
    %1740 = vmatprep.subr.mxu0 0.0
    %1741 = vmatpush1.msra.mxu0 %v76
    %1742 = vmatprep.subr.mxu0 0.0
    %1743 = vmatpush1.msra.mxu0 %v75
    %1744 = vmatprep.subr.mxu0 0.0
    %1745 = vmatpush1.msra.mxu0 %v74
    %1746 = vmatprep.subr.mxu0 0.0
    %1747 = vmatpush2.msra.mxu0 0.0
    %1748 = vmatprep.subr.mxu0 0.0
    %1749 = vmatpush2.msra.mxu0 0.0
    %1750 = vmatprep.subr.mxu0 0.0
    %1751 = vmatpush2.msra.mxu0 0.0
    %1752 = vmatprep.subr.mxu0 0.0
    %1753 = vmatpush2.msra.mxu0 0.0
    %1754 = vmatprep.subr.mxu0 0.0
    %1755 = vmatpush2.msra.mxu0 0.0
    %1756 = vmatprep.subr.mxu0 0.0
    %1757 = vmatpush2.msra.mxu0 0.0
    %1758 = vmatprep.subr.mxu0 0.0
    %1759 = vmatpush2.msra.mxu0 0.0
    %1760 = vmatprep.subr.mxu0 0.0
    %1761 = vmatpush2.msra.mxu0 0.0
    %1762 = vmatprep.subr.mxu0 0.0
    %1763 = vmatpush2.msra.mxu0 0.0
    %1764 = vmatprep.subr.mxu0 0.0
    %1765 = vmatpush2.msra.mxu0 0.0
    %1766 = vmatprep.subr.mxu0 0.0
    %1767 = vmatpush2.msra.mxu0 0.0
    %1768 = vmatprep.subr.mxu0 0.0
    %1769 = vmatpush2.msra.mxu0 0.0
    %1770 = vmatprep.subr.mxu0 0.0
    %1771 = vmatpush2.msra.mxu0 0.0
    %1772 = vmatprep.subr.mxu0 0.0
    %1773 = vmatpush2.msra.mxu0 0.0
    %1774 = vmatprep.subr.mxu0 0.0
    %1775 = vmatpush2.msra.mxu0 0.0
    %1776 = vmatprep.subr.mxu0 0.0
    %1777 = vmatpush2.msra.mxu0 0.0
    %1778 = vmatprep.mubr.f32.mxu0 0.0
    %1779 = vmatmul.mubr.f32.gmra.mxu0 %v1712
    %v1780 = vpop.f32.mrf.mxu0
    %v1781 = vadd.f32 %v244, %v1780
    %v1782 = vpop.f32.mrf.mxu0
    %1783 = vdwg.mxu0
    %1784 = vmatprep.subr.mxu0 0.0
    %1785 = vmatpush1.msra.mxu0 %v73
    %1786 = vmatprep.subr.mxu0 0.0
    %1787 = vmatpush1.msra.mxu0 %v72
    %1788 = vmatprep.subr.mxu0 0.0
    %1789 = vmatpush1.msra.mxu0 %v71
    %1790 = vmatprep.subr.mxu0 0.0
    %1791 = vmatpush1.msra.mxu0 %v70
    %1792 = vmatprep.subr.mxu0 0.0
    %1793 = vmatpush1.msra.mxu0 %v69
    %1794 = vmatprep.subr.mxu0 0.0
    %1795 = vmatpush1.msra.mxu0 %v68
    %1796 = vmatprep.subr.mxu0 0.0
    %1797 = vmatpush1.msra.mxu0 %v67
    %1798 = vmatprep.subr.mxu0 0.0
    %1799 = vmatpush1.msra.mxu0 %v66
    %1800 = vmatprep.subr.mxu0 0.0
    %1801 = vmatpush1.msra.mxu0 %v65
    %1802 = vmatprep.subr.mxu0 0.0
    %1803 = vmatpush1.msra.mxu0 %v64
    %1804 = vmatprep.subr.mxu0 0.0
    %1805 = vmatpush1.msra.mxu0 %v63
    %1806 = vmatprep.subr.mxu0 0.0
    %1807 = vmatpush1.msra.mxu0 %v62
    %1808 = vmatprep.subr.mxu0 0.0
    %1809 = vmatpush1.msra.mxu0 %v61
    %1810 = vmatprep.subr.mxu0 0.0
    %1811 = vmatpush1.msra.mxu0 %v60
    %1812 = vmatprep.subr.mxu0 0.0
    %1813 = vmatpush1.msra.mxu0 %v59
    %1814 = vmatprep.subr.mxu0 0.0
    %1815 = vmatpush1.msra.mxu0 %v58
    %1816 = vmatprep.subr.mxu0 0.0
    %1817 = vmatpush2.msra.mxu0 0.0
    %1818 = vmatprep.subr.mxu0 0.0
    %1819 = vmatpush2.msra.mxu0 0.0
    %1820 = vmatprep.subr.mxu0 0.0
    %1821 = vmatpush2.msra.mxu0 0.0
    %1822 = vmatprep.subr.mxu0 0.0
    %1823 = vmatpush2.msra.mxu0 0.0
    %1824 = vmatprep.subr.mxu0 0.0
    %1825 = vmatpush2.msra.mxu0 0.0
    %1826 = vmatprep.subr.mxu0 0.0
    %1827 = vmatpush2.msra.mxu0 0.0
    %1828 = vmatprep.subr.mxu0 0.0
    %1829 = vmatpush2.msra.mxu0 0.0
    %1830 = vmatprep.subr.mxu0 0.0
    %1831 = vmatpush2.msra.mxu0 0.0
    %1832 = vmatprep.subr.mxu0 0.0
    %1833 = vmatpush2.msra.mxu0 0.0
    %1834 = vmatprep.subr.mxu0 0.0
    %1835 = vmatpush2.msra.mxu0 0.0
    %1836 = vmatprep.subr.mxu0 0.0
    %1837 = vmatpush2.msra.mxu0 0.0
    %1838 = vmatprep.subr.mxu0 0.0
    %1839 = vmatpush2.msra.mxu0 0.0
    %1840 = vmatprep.subr.mxu0 0.0
    %1841 = vmatpush2.msra.mxu0 0.0
    %1842 = vmatprep.subr.mxu0 0.0
    %1843 = vmatpush2.msra.mxu0 0.0
    %1844 = vmatprep.subr.mxu0 0.0
    %1845 = vmatpush2.msra.mxu0 0.0
    %1846 = vmatprep.subr.mxu0 0.0
    %1847 = vmatpush2.msra.mxu0 0.0
    %1848 = vmatprep.mubr.f32.mxu0 0.0
    %1849 = vmatmul.mubr.f32.gmra.mxu0 %v1635
    %v1850 = vpop.f32.mrf.mxu0
    %v1851 = vadd.f32 0.0, %v1850
    %v1852 = vpop.f32.mrf.mxu0
    %1853 = vdwg.mxu0
    %v1854 = vadd.f32 %v1561, %v1851
    %v1855 = vmax.f32 %v1854, 0.0
    %1856 = vmatprep.subr.mxu0 0.0
    %1857 = vmatpush1.msra.mxu0 %v73
    %1858 = vmatprep.subr.mxu0 0.0
    %1859 = vmatpush1.msra.mxu0 %v72
    %1860 = vmatprep.subr.mxu0 0.0
    %1861 = vmatpush1.msra.mxu0 %v71
    %1862 = vmatprep.subr.mxu0 0.0
    %1863 = vmatpush1.msra.mxu0 %v70
    %1864 = vmatprep.subr.mxu0 0.0
    %1865 = vmatpush1.msra.mxu0 %v69
    %1866 = vmatprep.subr.mxu0 0.0
    %1867 = vmatpush1.msra.mxu0 %v68
    %1868 = vmatprep.subr.mxu0 0.0
    %1869 = vmatpush1.msra.mxu0 %v67
    %1870 = vmatprep.subr.mxu0 0.0
    %1871 = vmatpush1.msra.mxu0 %v66
    %1872 = vmatprep.subr.mxu0 0.0
    %1873 = vmatpush1.msra.mxu0 %v65
    %1874 = vmatprep.subr.mxu0 0.0
    %1875 = vmatpush1.msra.mxu0 %v64
    %1876 = vmatprep.subr.mxu0 0.0
    %1877 = vmatpush1.msra.mxu0 %v63
    %1878 = vmatprep.subr.mxu0 0.0
    %1879 = vmatpush1.msra.mxu0 %v62
    %1880 = vmatprep.subr.mxu0 0.0
    %1881 = vmatpush1.msra.mxu0 %v61
    %1882 = vmatprep.subr.mxu0 0.0
    %1883 = vmatpush1.msra.mxu0 %v60
    %1884 = vmatprep.subr.mxu0 0.0
    %1885 = vmatpush1.msra.mxu0 %v59
    %1886 = vmatprep.subr.mxu0 0.0
    %1887 = vmatpush1.msra.mxu0 %v58
    %1888 = vmatprep.subr.mxu0 0.0
    %1889 = vmatpush2.msra.mxu0 0.0
    %1890 = vmatprep.subr.mxu0 0.0
    %1891 = vmatpush2.msra.mxu0 0.0
    %1892 = vmatprep.subr.mxu0 0.0
    %1893 = vmatpush2.msra.mxu0 0.0
    %1894 = vmatprep.subr.mxu0 0.0
    %1895 = vmatpush2.msra.mxu0 0.0
    %1896 = vmatprep.subr.mxu0 0.0
    %1897 = vmatpush2.msra.mxu0 0.0
    %1898 = vmatprep.subr.mxu0 0.0
    %1899 = vmatpush2.msra.mxu0 0.0
    %1900 = vmatprep.subr.mxu0 0.0
    %1901 = vmatpush2.msra.mxu0 0.0
    %1902 = vmatprep.subr.mxu0 0.0
    %1903 = vmatpush2.msra.mxu0 0.0
    %1904 = vmatprep.subr.mxu0 0.0
    %1905 = vmatpush2.msra.mxu0 0.0
    %1906 = vmatprep.subr.mxu0 0.0
    %1907 = vmatpush2.msra.mxu0 0.0
    %1908 = vmatprep.subr.mxu0 0.0
    %1909 = vmatpush2.msra.mxu0 0.0
    %1910 = vmatprep.subr.mxu0 0.0
    %1911 = vmatpush2.msra.mxu0 0.0
    %1912 = vmatprep.subr.mxu0 0.0
    %1913 = vmatpush2.msra.mxu0 0.0
    %1914 = vmatprep.subr.mxu0 0.0
    %1915 = vmatpush2.msra.mxu0 0.0
    %1916 = vmatprep.subr.mxu0 0.0
    %1917 = vmatpush2.msra.mxu0 0.0
    %1918 = vmatprep.subr.mxu0 0.0
    %1919 = vmatpush2.msra.mxu0 0.0
    %1920 = vmatprep.mubr.f32.mxu0 0.0
    %1921 = vmatmul.mubr.f32.gmra.mxu0 %v1855
    %v1922 = vpop.f32.mrf.mxu0
    %v1923 = vadd.f32 0.0, %v1922
    %v1924 = vpop.f32.mrf.mxu0
    %1925 = vdwg.mxu0
    %v1926 = vadd.f32 %v1781, %v1923
    %v1927 = vmax.f32 %v1926, 0.0
    %v1929 = vrot.slane %v1927, 7
    %vm1931 = vcmask 1040384
    %v1932 = vsel %vm1931, %v1712, %v1929
    %vm1933 = vcmask 254976
    %1934 = vst.msk [vmem:[#allocation8] sm:$0x3] %vm1933, %v1932
    %v1935 = vld [vmem:[#allocation5 + $0x190] sm:$0xff]
    %v1936 = vld [vmem:[#allocation5 + $0x198] sm:$0xff]
    %v1937 = vld [vmem:[#allocation5 + $0x1a0] sm:$0xff]
    %v1938 = vld [vmem:[#allocation5 + $0x1a8] sm:$0xff]
    %v1939 = vld [vmem:[#allocation5 + $0x1b0] sm:$0xff]
    %v1940 = vld [vmem:[#allocation5 + $0x1b8] sm:$0xff]
    %v1941 = vld [vmem:[#allocation5 + $0x1c0] sm:$0xff]
    %v1942 = vld [vmem:[#allocation5 + $0x1c8] sm:$0xff]
    %v1943 = vld [vmem:[#allocation5 + $0x1d0] sm:$0xff]
    %v1944 = vld [vmem:[#allocation5 + $0x1d8] sm:$0xff]
    %v1945 = vld [vmem:[#allocation5 + $0x1e0] sm:$0xff]
    %v1946 = vld [vmem:[#allocation5 + $0x1e8] sm:$0xff]
    %v1947 = vld [vmem:[#allocation5 + $0x1f0] sm:$0xff]
    %v1948 = vld [vmem:[#allocation5 + $0x1f8] sm:$0xff]
    %v1949 = vld [vmem:[#allocation5 + $0x200] sm:$0xff]
    %v1950 = vld [vmem:[#allocation5 + $0x208] sm:$0xff]
    %v1951 = vrot.slane %v41, 2
    %1953 = vmatprep.subr.mxu0 0.0
    %1954 = vmatpush1.msra.mxu0 %v1950
    %1955 = vmatprep.subr.mxu0 0.0
    %1956 = vmatpush1.msra.mxu0 %v1949
    %1957 = vmatprep.subr.mxu0 0.0
    %1958 = vmatpush1.msra.mxu0 %v1948
    %1959 = vmatprep.subr.mxu0 0.0
    %1960 = vmatpush1.msra.mxu0 %v1947
    %1961 = vmatprep.subr.mxu0 0.0
    %1962 = vmatpush1.msra.mxu0 %v1946
    %1963 = vmatprep.subr.mxu0 0.0
    %1964 = vmatpush1.msra.mxu0 %v1945
    %1965 = vmatprep.subr.mxu0 0.0
    %1966 = vmatpush1.msra.mxu0 %v1944
    %1967 = vmatprep.subr.mxu0 0.0
    %1968 = vmatpush1.msra.mxu0 %v1943
    %1969 = vmatprep.subr.mxu0 0.0
    %1970 = vmatpush1.msra.mxu0 %v1942
    %1971 = vmatprep.subr.mxu0 0.0
    %1972 = vmatpush1.msra.mxu0 %v1941
    %1973 = vmatprep.subr.mxu0 0.0
    %1974 = vmatpush1.msra.mxu0 %v1940
    %1975 = vmatprep.subr.mxu0 0.0
    %1976 = vmatpush1.msra.mxu0 %v1939
    %1977 = vmatprep.subr.mxu0 0.0
    %1978 = vmatpush1.msra.mxu0 %v1938
    %1979 = vmatprep.subr.mxu0 0.0
    %1980 = vmatpush1.msra.mxu0 %v1937
    %1981 = vmatprep.subr.mxu0 0.0
    %1982 = vmatpush1.msra.mxu0 %v1936
    %1983 = vmatprep.subr.mxu0 0.0
    %1984 = vmatpush1.msra.mxu0 %v1935
    %1985 = vmatprep.subr.mxu0 0.0
    %1986 = vmatpush2.msra.mxu0 0.0
    %1987 = vmatprep.subr.mxu0 0.0
    %1988 = vmatpush2.msra.mxu0 0.0
    %1989 = vmatprep.subr.mxu0 0.0
    %1990 = vmatpush2.msra.mxu0 0.0
    %1991 = vmatprep.subr.mxu0 0.0
    %1992 = vmatpush2.msra.mxu0 0.0
    %1993 = vmatprep.subr.mxu0 0.0
    %1994 = vmatpush2.msra.mxu0 0.0
    %1995 = vmatprep.subr.mxu0 0.0
    %1996 = vmatpush2.msra.mxu0 0.0
    %1997 = vmatprep.subr.mxu0 0.0
    %1998 = vmatpush2.msra.mxu0 0.0
    %1999 = vmatprep.subr.mxu0 0.0
    %2000 = vmatpush2.msra.mxu0 0.0
    %2001 = vmatprep.subr.mxu0 0.0
    %2002 = vmatpush2.msra.mxu0 0.0
    %2003 = vmatprep.subr.mxu0 0.0
    %2004 = vmatpush2.msra.mxu0 0.0
    %2005 = vmatprep.subr.mxu0 0.0
    %2006 = vmatpush2.msra.mxu0 0.0
    %2007 = vmatprep.subr.mxu0 0.0
    %2008 = vmatpush2.msra.mxu0 0.0
    %2009 = vmatprep.subr.mxu0 0.0
    %2010 = vmatpush2.msra.mxu0 0.0
    %2011 = vmatprep.subr.mxu0 0.0
    %2012 = vmatpush2.msra.mxu0 0.0
    %2013 = vmatprep.subr.mxu0 0.0
    %2014 = vmatpush2.msra.mxu0 0.0
    %2015 = vmatprep.subr.mxu0 0.0
    %2016 = vmatpush2.msra.mxu0 0.0
    %2017 = vmatprep.mubr.f32.mxu0 0.0
    %2018 = vmatmul.mubr.f32.gmra.mxu0 %v1927
    %v2019 = vpop.f32.mrf.mxu0
    %v2020 = vadd.f32 %v1951, %v2019
    %v2021 = vpop.f32.mrf.mxu0
    %2022 = vdwg.mxu0
    %v2023 = vlaneseq
    %v2024 = vand.u32 %v2023, 127
    %vm2025 = vcmp.lt.s32.totalorder %v2024, 8
    %v2026 = vsel %vm2025, %v2020, -1e+30
    %v2027 = vsel %vm1931, %v2026, -inf
    %2028 = vmax.xlane.f32.xlu0 %v2027
    %v2029 = vpop.xlane.xlu0 %2028
    %v2030 = vsub.f32 %v2026, %v2029
    %v2031 = vmul.f32 %v2030, 1.442695
    %v2032 = vpow.pop %v2031
    %v2033 = vsel %vm1931, %v2032, 0.0
    %2034 = vadd.xlane.f32.xlu0 %v2033
    %v2035 = vpop.xlane.xlu0 %2034
    %v2036 = vlog2.pop %v2035
    %v2037 = vmul.f32 %v2036, 0.6931472
    %v2038 = vsub.f32 %v2030, %v2037
    %vm2039 = vcmask 57344
    %2040 = vst.msk [vmem:[#allocation7] sm:$0x1] %vm2039, %v2038
    // Predicated region
    $region18: #{tpu_custom_call.1} parent=1 // pred_check
      _
    $region19: #{tpu_custom_call.1} parent=1 // pred_check_branch
      %2042 = sbr.rel (0) target = $region21
    $region20: #{tpu_custom_call.1} parent=1 // pred_region
      %s2044 = ssub.s32 16, 16
      %2045 = vsyncadd [#allocation4], %s2044
      %s2047 = sshll.u32 [#allocation7], 4
      %s2048 = int_to_ptr.vmem [resolvable:$true] %s2047
      %2050 = dma.vmem_to_hbm [thread:$0]  %s2048, 16, %s2, [#allocation4]
    $region21: #{tpu_custom_call.1} parent=1 // pred_fallthru
      _
    // Predicated region
    $region22: #{tpu_custom_call.1} parent=1 // pred_check
      _
    $region23: #{tpu_custom_call.1} parent=1 // pred_check_branch
      %2052 = sbr.rel (0) target = $region25
    $region24: #{tpu_custom_call.1} parent=1 // pred_region
      %s2054 = ssub.s32 32, 32
      %2055 = vsyncadd [#allocation9], %s2054
      %s2057 = sshll.u32 [#allocation8], 4
      %s2058 = int_to_ptr.vmem [resolvable:$true] %s2057
      %2060 = dma.vmem_to_hbm [thread:$0]  %s2058, 32, %s3, [#allocation9]
    $region25: #{tpu_custom_call.1} parent=1 // pred_fallthru
      _
    // Predicated region
    $region26: #{tpu_custom_call.1} parent=1 // pred_check
      _
    $region27: #{tpu_custom_call.1} parent=1 // pred_check_branch
      %2062 = sbr.rel (0) target = $region29
    $region28: #{tpu_custom_call.1} parent=1 // pred_region
      %2063 = dma.done [#allocation4], 16
    $region29: #{tpu_custom_call.1} parent=1 // pred_fallthru
      _
    // Predicated region
    $region30: #{tpu_custom_call.1} parent=1 // pred_check
      _
    $region31: #{tpu_custom_call.1} parent=1 // pred_check_branch
      %2065 = sbr.rel (0) target = $region33
    $region32: #{tpu_custom_call.1} parent=1 // pred_region
      %2066 = dma.done [#allocation9], 32
    $region33: #{tpu_custom_call.1} parent=1 // pred_fallthru
      _
    %2067 = vsyncpa [#allocation3], 1
    %2068 = vsyncpa [#allocation6], 1
    %2069 = vsyncpa [#allocation4], 1
    %2070 = vsyncpa [#allocation9], 1

</llo_original>
